<compile_context>
chip_gen: v7x
topology: tpu7x:2x2x1
jax: 0.10.0
libtpu: 0.0.40
codegen_flags: <defaults>
</compile_context>

<pallas_src>
import jax
import jax.numpy as jnp
import numpy as np
from jax import lax
from jax.experimental import pallas as pl
from jax.experimental.pallas import tpu as pltpu

LANE = 128


# ----------------------------- fused Pallas kernel ------------------------------

def _make_fused_kernel(H, W, Cp):
    """Kernel processing one image (H*W rows, Cp lane-padded channels) per grid step."""
    K3 = 3 * Cp

    def kernel(x_ref, w1_ref, b1_ref, w2_ref, b2_ref, o_ref, hk_ref):
        # x_ref : (1, H*W, Cp) bf16     w1_ref: (Cp, Cp) bf16        b1_ref: (1, Cp) f32
        # w2_ref: (3, 3*Cp, Cp) bf16    b2_ref: (1, Cp) f32          o_ref : (1, H*W, Cp) f32
        # hk_ref: (H+2, W, 3*Cp) bf16 VMEM scratch (kw-shifted taps, kh zero-halo rows)
        x = x_ref[0]                                                 # (H*W, Cp) bf16

        # ---- conv1x1 (+folded BN1 scale) + bias + ReLU : one MXU matmul (f32 acc) ----
        h1 = jnp.dot(x, w1_ref[...], preferred_element_type=jnp.float32)
        h1 = jnp.maximum(h1 + b1_ref[...], 0.0)                      # (H*W, Cp) f32
        h1b = h1.astype(jnp.bfloat16).reshape(H, W, Cp)              # cast to bf16 ONCE

        # ---- stage kw-shifted taps:  hk[r, x, kw*Cp:(kw+1)*Cp] = hzp[r-1, x+kw-1, :] ----
        # kh zero-halo rows (rewritten every step: cheap and megacore-safe).
        zrow = jnp.zeros((1, W, K3), jnp.bfloat16)
        hk_ref[0:1, :, :] = zrow
        hk_ref[H + 1:H + 2, :, :] = zrow

        zcol = jnp.zeros((H, 1, Cp), jnp.bfloat16)
        left = jnp.concatenate([zcol, h1b[:, :W - 1, :]], axis=1)    # kw=0 tap: h[:, x-1]
        right = jnp.concatenate([h1b[:, 1:, :], zcol], axis=1)       # kw=2 tap: h[:, x+1]
        # three aligned full-plane stores (lane offsets are multiples of 128)
        hk_ref[1:H + 1, :, 0:Cp] = left
        hk_ref[1:H + 1, :, Cp:2 * Cp] = h1b
        hk_ref[1:H + 1, :, 2 * Cp:3 * Cp] = right

        # ---- 3x3 conv (+folded BN2 scale): 3 accumulated MXU matmuls with K = 3*Cp ----
        # kh handled by free leading-axis plane slices of hk.
        def tap(kh):
            return hk_ref[kh:kh + H, :, :].reshape(H * W, K3)        # (H*W, 3*Cp) bf16

        acc = jnp.dot(tap(0), w2_ref[0], preferred_element_type=jnp.float32)
        acc = acc + jnp.dot(tap(1), w2_ref[1], preferred_element_type=jnp.float32)
        acc = acc + jnp.dot(tap(2), w2_ref[2], preferred_element_type=jnp.float32)

        # ---- BN2 shift + identity residual (bf16 input) + ReLU, f32 epilogue ----
        o_ref[0] = jnp.maximum(acc + b2_ref[...] + x, 0.0).astype(o_ref.dtype)

    return kernel


# --------------------------------- wrapper ---------------------------------------

def _round_up(v, m):
    return ((v + m - 1) // m) * m


def basic_block_forward(x_nchw, params, eps=1e-5):
    """x_nchw: (N, C, H, W) float32, PyTorch layout."""
    N, C, H, W = x_nchw.shape
    P = params["w1"].shape[0]                    # planes
    assert C == P, "identity residual requires inplanes == planes"
    Cp = _round_up(max(C, LANE), LANE)           # lane-dense / MXU-native channel width

    # NCHW -> NHWC -> (N, H*W, Cp) bf16 with zero channel padding (lane axis dense).
    # TODO(synk): accept NHWC at the block boundary to avoid these extra HBM passes.
    x_nhwc = jnp.transpose(x_nchw, (0, 2, 3, 1))
    x_p = jnp.pad(x_nhwc, ((0, 0), (0, 0), (0, 0), (0, Cp - C)))
    x_p = x_p.reshape(N, H * W, Cp).astype(jnp.bfloat16)

    # Fold BN (eval mode) into the conv weights (scale) and a bias vector (shift).
    s1 = params["g1"] * lax.rsqrt(params["v1"] + eps)
    b1 = params["be1"] - params["m1"] * s1
    s2 = params["g2"] * lax.rsqrt(params["v2"] + eps)
    b2 = params["be2"] - params["m2"] * s2

    # conv1 weight: torch (P, C, 1, 1) -> (Cin, Cout), scale folded, pad, bf16.
    w1 = jnp.transpose(params["w1"], (2, 3, 1, 0)).reshape(C, P) * s1.reshape(1, P)
    w1_p = jnp.pad(w1, ((0, Cp - C), (0, Cp - P))).astype(jnp.bfloat16)

    # conv2 weight: torch (P, P, 3, 3) -> (kh, kw, Cin, Cout), scale folded, pad channels,
    # then fold kw into the matmul K dimension: (3, 3*Cp, Cp) so row kw*Cp+cin matches hk.
    w2 = jnp.transpose(params["w2"], (2, 3, 1, 0)) * s2.reshape(1, 1, 1, P)
    w2_p = jnp.pad(w2, ((0, 0), (0, 0), (0, Cp - P), (0, Cp - P)))
    w2_p = w2_p.reshape(3, 3 * Cp, Cp).astype(jnp.bfloat16)

    b1_p = jnp.pad(b1, (0, Cp - P)).reshape(1, Cp).astype(jnp.float32)
    b2_p = jnp.pad(b2, (0, Cp - P)).reshape(1, Cp).astype(jnp.float32)

    out_p = pl.pallas_call(
        _make_fused_kernel(H, W, Cp),
        out_shape=jax.ShapeDtypeStruct((N, H * W, Cp), jnp.float32),
        grid=(N,),
        in_specs=[
            pl.BlockSpec((1, H * W, Cp), lambda n: (n, 0, 0)),        # x (also residual)
            pl.BlockSpec((Cp, Cp), lambda n: (0, 0),                  # w1 (BN1-scaled)
                         pipeline_mode=pl.Buffered(1)),
            pl.BlockSpec((1, Cp), lambda n: (0, 0),                   # b1
                         pipeline_mode=pl.Buffered(1)),
            pl.BlockSpec((3, 3 * Cp, Cp), lambda n: (0, 0, 0),        # w2 (BN2-scaled)
                         pipeline_mode=pl.Buffered(1)),
            pl.BlockSpec((1, Cp), lambda n: (0, 0),                   # b2
                         pipeline_mode=pl.Buffered(1)),
        ],
        out_specs=pl.BlockSpec((1, H * W, Cp), lambda n: (n, 0, 0)),
        scratch_shapes=[pltpu.VMEM((H + 2, W, 3 * Cp), jnp.bfloat16)],
        compiler_params=pltpu.CompilerParams(
            dimension_semantics=("parallel",)),
    )(x_p, w1_p, b1_p, w2_p, b2_p)

    # drop channel padding, back to NCHW
    out = out_p.reshape(N, H, W, Cp)[..., :C]
    return jnp.transpose(out, (0, 3, 1, 2))


# ----------------------------- pure-JAX reference --------------------------------

def reference_forward(x, params, eps=1e-5):
    dn = ("NCHW", "OIHW", "NCHW")

    def bn(h, g, be, m, v):
        s = g * lax.rsqrt(v + eps)
        return h * s.reshape(1, -1, 1, 1) + (be - m * s).reshape(1, -1, 1, 1)

    h = lax.conv_general_dilated(x, params["w1"], (1, 1), "VALID", dimension_numbers=dn)
    h = jnp.maximum(bn(h, params["g1"], params["be1"], params["m1"], params["v1"]), 0.0)
    h = lax.conv_general_dilated(h, params["w2"], (1, 1), ((1, 1), (1, 1)), dimension_numbers=dn)
    h = bn(h, params["g2"], params["be2"], params["m2"], params["v2"])
    return jnp.maximum(h + x, 0.0)


# ------------------------------------ main ----------------------------------------

if __name__ == "__main__":
    N, C, H, W = 2, 8, 16, 16            # inplanes == planes == 8, stride=1
    P = C

    key = jax.random.PRNGKey(0)
    ks = jax.random.split(key, 12)

    x = jax.random.normal(ks[0], (N, C, H, W), dtype=jnp.float32)

    params = {
        "w1":  0.1 * jax.random.normal(ks[1], (P, C, 1, 1), dtype=jnp.float32),
        "g1":  1.0 + 0.1 * jax.random.normal(ks[2], (P,), dtype=jnp.float32),
        "be1": 0.1 * jax.random.normal(ks[3], (P,), dtype=jnp.float32),
        "m1":  0.1 * jax.random.normal(ks[4], (P,), dtype=jnp.float32),
        "v1":  jax.random.uniform(ks[5], (P,), jnp.float32, 0.5, 1.5),
        "w2":  0.1 * jax.random.normal(ks[6], (P, P, 3, 3), dtype=jnp.float32),
        "g2":  1.0 + 0.1 * jax.random.normal(ks[7], (P,), dtype=jnp.float32),
        "be2": 0.1 * jax.random.normal(ks[8], (P,), dtype=jnp.float32),
        "m2":  0.1 * jax.random.normal(ks[9], (P,), dtype=jnp.float32),
        "v2":  jax.random.uniform(ks[10], (P,), jnp.float32, 0.5, 1.5),
    }

    fwd = jax.jit(basic_block_forward)
    out = jax.block_until_ready(fwd(x, params))
    ref = jax.block_until_ready(reference_forward(x, params))

    assert out.shape == (N, C, H, W)
    np.testing.assert_allclose(np.asarray(out), np.asarray(ref), atol=2e-2, rtol=2e-2)

    print("KERNEL_OK")
</pallas_src>

<mosaic_0001>
module attributes {stable_mosaic.version = 11 : i64} {
  func.func @kernel(%arg0: i32, %arg1: memref<1x256x128xbf16, #tpu.memory_space<vmem>>, %arg2: memref<128x128xbf16, #tpu.memory_space<vmem>>, %arg3: memref<1x128xf32, #tpu.memory_space<vmem>>, %arg4: memref<3x384x128xbf16, #tpu.memory_space<vmem>>, %arg5: memref<1x128xf32, #tpu.memory_space<vmem>>, %arg6: memref<1x256x128xf32, #tpu.memory_space<vmem>>, %arg7: memref<18x16x384xbf16, #tpu.memory_space<vmem>>) attributes {dimension_semantics = [#tpu.dimension_semantics<parallel>], iteration_bounds = array<i64: 2>, scalar_prefetch = 0 : i64, scratch_operands = 1 : i64, tpu.core_type = #tpu.core_type<tc>, window_params = [{transform_indices = @transform_0, window_bounds = array<i64: 1, 256, 128>}, {pipeline_mode = #tpu.pipeline_mode<synchronous>, transform_indices = @transform_1, window_bounds = array<i64: 128, 128>}, {pipeline_mode = #tpu.pipeline_mode<synchronous>, transform_indices = @transform_2, window_bounds = array<i64: 1, 128>}, {pipeline_mode = #tpu.pipeline_mode<synchronous>, transform_indices = @transform_3, window_bounds = array<i64: 3, 384, 128>}, {pipeline_mode = #tpu.pipeline_mode<synchronous>, transform_indices = @transform_4, window_bounds = array<i64: 1, 128>}, {transform_indices = @transform_5, window_bounds = array<i64: 1, 256, 128>}]} {
    %c0 = arith.constant 0 : index
    %c0_0 = arith.constant 0 : index
    %c0_1 = arith.constant 0 : index
    %0 = vector.load %arg1[%c0, %c0_0, %c0_1] : memref<1x256x128xbf16, #tpu.memory_space<vmem>>, vector<1x256x128xbf16>
    %1 = vector.shape_cast %0 : vector<1x256x128xbf16> to vector<256x128xbf16>
    %c0_2 = arith.constant 0 : index
    %c0_3 = arith.constant 0 : index
    %2 = vector.load %arg2[%c0_2, %c0_3] : memref<128x128xbf16, #tpu.memory_space<vmem>>, vector<128x128xbf16>
    %cst = arith.constant dense<0.000000e+00> : vector<256x128xf32>
    %3 = tpu.matmul %1, %2, %cst {dimension_numbers = #tpu.dot_dimension_numbers<[1], [0], [0], [1], [0, 0, 1, 1], [], []>} : vector<256x128xbf16>, vector<128x128xbf16>, vector<256x128xf32> -> vector<256x128xf32>
    %c0_4 = arith.constant 0 : index
    %c0_5 = arith.constant 0 : index
    %4 = vector.load %arg3[%c0_4, %c0_5] : memref<1x128xf32, #tpu.memory_space<vmem>>, vector<1x128xf32>
    %5 = vector.broadcast %4 : vector<1x128xf32> to vector<256x128xf32>
    %6 = arith.addf %3, %5 : vector<256x128xf32>
    %cst_6 = arith.constant 0.000000e+00 : f32
    %7 = vector.broadcast %cst_6 : f32 to vector<256x128xf32>
    %8 = arith.maximumf %6, %7 : vector<256x128xf32>
    %9 = arith.truncf %8 : vector<256x128xf32> to vector<256x128xbf16>
    %10 = vector.shape_cast %9 : vector<256x128xbf16> to vector<16x16x128xbf16>
    %cst_7 = arith.constant 0.000000e+00 : bf16
    %11 = vector.broadcast %cst_7 : bf16 to vector<1x16x384xbf16>
    %c0_8 = arith.constant 0 : index
    %c0_9 = arith.constant 0 : index
    %c0_10 = arith.constant 0 : index
    %12 = vector.load %arg7[%c0_8, %c0_9, %c0_10] : memref<18x16x384xbf16, #tpu.memory_space<vmem>>, vector<1x16x384xbf16>
    tpu.vector_store %arg7[%c0_8, %c0_9, %c0_10], %11 {strides = array<i32>} : memref<18x16x384xbf16, #tpu.memory_space<vmem>>, vector<1x16x384xbf16>,
    %c17 = arith.constant 17 : index
    %c0_11 = arith.constant 0 : index
    %c0_12 = arith.constant 0 : index
    %13 = vector.load %arg7[%c17, %c0_11, %c0_12] : memref<18x16x384xbf16, #tpu.memory_space<vmem>>, vector<1x16x384xbf16>
    tpu.vector_store %arg7[%c17, %c0_11, %c0_12], %11 {strides = array<i32>} : memref<18x16x384xbf16, #tpu.memory_space<vmem>>, vector<1x16x384xbf16>,
    %cst_13 = arith.constant 0.000000e+00 : bf16
    %14 = vector.broadcast %cst_13 : bf16 to vector<16x1x128xbf16>
    %15 = vector.extract_strided_slice %10 {offsets = [0, 0, 0], sizes = [16, 15, 128], strides = [1, 1, 1]} : vector<16x16x128xbf16> to vector<16x15x128xbf16>
    %16 = tpu.concatenate %14, %15 in 1 : vector<16x1x128xbf16>, vector<16x15x128xbf16> -> vector<16x16x128xbf16>
    %17 = vector.extract_strided_slice %10 {offsets = [0, 1, 0], sizes = [16, 15, 128], strides = [1, 1, 1]} : vector<16x16x128xbf16> to vector<16x15x128xbf16>
    %18 = tpu.concatenate %17, %14 in 1 : vector<16x15x128xbf16>, vector<16x1x128xbf16> -> vector<16x16x128xbf16>
    %c1 = arith.constant 1 : index
    %c0_14 = arith.constant 0 : index
    %c0_15 = arith.constant 0 : index
    %19 = vector.load %arg7[%c1, %c0_14, %c0_15] : memref<18x16x384xbf16, #tpu.memory_space<vmem>>, vector<16x16x128xbf16>
    tpu.vector_store %arg7[%c1, %c0_14, %c0_15], %16 {strides = array<i32>} : memref<18x16x384xbf16, #tpu.memory_space<vmem>>, vector<16x16x128xbf16>,
    %c1_16 = arith.constant 1 : index
    %c0_17 = arith.constant 0 : index
    %c128 = arith.constant 128 : index
    %20 = vector.load %arg7[%c1_16, %c0_17, %c128] : memref<18x16x384xbf16, #tpu.memory_space<vmem>>, vector<16x16x128xbf16>
    tpu.vector_store %arg7[%c1_16, %c0_17, %c128], %10 {strides = array<i32>} : memref<18x16x384xbf16, #tpu.memory_space<vmem>>, vector<16x16x128xbf16>,
    %c1_18 = arith.constant 1 : index
    %c0_19 = arith.constant 0 : index
    %c256 = arith.constant 256 : index
    %21 = vector.load %arg7[%c1_18, %c0_19, %c256] : memref<18x16x384xbf16, #tpu.memory_space<vmem>>, vector<16x16x128xbf16>
    tpu.vector_store %arg7[%c1_18, %c0_19, %c256], %18 {strides = array<i32>} : memref<18x16x384xbf16, #tpu.memory_space<vmem>>, vector<16x16x128xbf16>,
    %c0_20 = arith.constant 0 : index
    %c0_21 = arith.constant 0 : index
    %c0_22 = arith.constant 0 : index
    %22 = vector.load %arg7[%c0_20, %c0_21, %c0_22] : memref<18x16x384xbf16, #tpu.memory_space<vmem>>, vector<16x16x384xbf16>
    %23 = vector.shape_cast %22 : vector<16x16x384xbf16> to vector<256x384xbf16>
    %c0_23 = arith.constant 0 : index
    %c0_24 = arith.constant 0 : index
    %c0_25 = arith.constant 0 : index
    %24 = vector.load %arg4[%c0_23, %c0_24, %c0_25] : memref<3x384x128xbf16, #tpu.memory_space<vmem>>, vector<1x384x128xbf16>
    %25 = vector.shape_cast %24 : vector<1x384x128xbf16> to vector<384x128xbf16>
    %cst_26 = arith.constant dense<0.000000e+00> : vector<256x128xf32>
    %26 = tpu.matmul %23, %25, %cst_26 {dimension_numbers = #tpu.dot_dimension_numbers<[1], [0], [0], [1], [0, 0, 1, 1], [], []>} : vector<256x384xbf16>, vector<384x128xbf16>, vector<256x128xf32> -> vector<256x128xf32>
    %c1_27 = arith.constant 1 : index
    %c0_28 = arith.constant 0 : index
    %c0_29 = arith.constant 0 : index
    %27 = vector.load %arg7[%c1_27, %c0_28, %c0_29] : memref<18x16x384xbf16, #tpu.memory_space<vmem>>, vector<16x16x384xbf16>
    %28 = vector.shape_cast %27 : vector<16x16x384xbf16> to vector<256x384xbf16>
    %c1_30 = arith.constant 1 : index
    %c0_31 = arith.constant 0 : index
    %c0_32 = arith.constant 0 : index
    %29 = vector.load %arg4[%c1_30, %c0_31, %c0_32] : memref<3x384x128xbf16, #tpu.memory_space<vmem>>, vector<1x384x128xbf16>
    %30 = vector.shape_cast %29 : vector<1x384x128xbf16> to vector<384x128xbf16>
    %cst_33 = arith.constant dense<0.000000e+00> : vector<256x128xf32>
    %31 = tpu.matmul %28, %30, %cst_33 {dimension_numbers = #tpu.dot_dimension_numbers<[1], [0], [0], [1], [0, 0, 1, 1], [], []>} : vector<256x384xbf16>, vector<384x128xbf16>, vector<256x128xf32> -> vector<256x128xf32>
    %32 = arith.addf %26, %31 : vector<256x128xf32>
    %c2 = arith.constant 2 : index
    %c0_34 = arith.constant 0 : index
    %c0_35 = arith.constant 0 : index
    %33 = vector.load %arg7[%c2, %c0_34, %c0_35] : memref<18x16x384xbf16, #tpu.memory_space<vmem>>, vector<16x16x384xbf16>
    %34 = vector.shape_cast %33 : vector<16x16x384xbf16> to vector<256x384xbf16>
    %c2_36 = arith.constant 2 : index
    %c0_37 = arith.constant 0 : index
    %c0_38 = arith.constant 0 : index
    %35 = vector.load %arg4[%c2_36, %c0_37, %c0_38] : memref<3x384x128xbf16, #tpu.memory_space<vmem>>, vector<1x384x128xbf16>
    %36 = vector.shape_cast %35 : vector<1x384x128xbf16> to vector<384x128xbf16>
    %cst_39 = arith.constant dense<0.000000e+00> : vector<256x128xf32>
    %37 = tpu.matmul %34, %36, %cst_39 {dimension_numbers = #tpu.dot_dimension_numbers<[1], [0], [0], [1], [0, 0, 1, 1], [], []>} : vector<256x384xbf16>, vector<384x128xbf16>, vector<256x128xf32> -> vector<256x128xf32>
    %38 = arith.addf %32, %37 : vector<256x128xf32>
    %c0_40 = arith.constant 0 : index
    %c0_41 = arith.constant 0 : index
    %39 = vector.load %arg5[%c0_40, %c0_41] : memref<1x128xf32, #tpu.memory_space<vmem>>, vector<1x128xf32>
    %40 = vector.broadcast %39 : vector<1x128xf32> to vector<256x128xf32>
    %41 = arith.addf %38, %40 : vector<256x128xf32>
    %42 = arith.extf %1 : vector<256x128xbf16> to vector<256x128xf32>
    %43 = arith.addf %41, %42 : vector<256x128xf32>
    %cst_42 = arith.constant 0.000000e+00 : f32
    %44 = vector.broadcast %cst_42 : f32 to vector<256x128xf32>
    %45 = arith.maximumf %43, %44 : vector<256x128xf32>
    %c0_43 = arith.constant 0 : index
    %c0_44 = arith.constant 0 : index
    %c0_45 = arith.constant 0 : index
    %46 = vector.load %arg6[%c0_43, %c0_44, %c0_45] : memref<1x256x128xf32, #tpu.memory_space<vmem>>, vector<1x256x128xf32>
    %47 = vector.shape_cast %46 : vector<1x256x128xf32> to vector<256x128xf32>
    %48 = vector.shape_cast %45 : vector<256x128xf32> to vector<1x256x128xf32>
    tpu.vector_store %arg6[%c0_43, %c0_44, %c0_45], %48 {strides = array<i32>} : memref<1x256x128xf32, #tpu.memory_space<vmem>>, vector<1x256x128xf32>,
    return
  }
  func.func @transform_0(%arg0: i32) -> (i32, i32, i32) {
    %c0_i32 = arith.constant 0 : i32
    %c0_i32_0 = arith.constant 0 : i32
    %c0_i32_1 = arith.constant 0 : i32
    return %arg0, %c0_i32, %c0_i32_0 : i32, i32, i32
  }
  func.func @transform_1(%arg0: i32) -> (i32, i32) {
    %c0_i32 = arith.constant 0 : i32
    %c0_i32_0 = arith.constant 0 : i32
    %c0_i32_1 = arith.constant 0 : i32
    return %c0_i32, %c0_i32_0 : i32, i32
  }
  func.func @transform_2(%arg0: i32) -> (i32, i32) {
    %c0_i32 = arith.constant 0 : i32
    %c0_i32_0 = arith.constant 0 : i32
    %c0_i32_1 = arith.constant 0 : i32
    return %c0_i32, %c0_i32_0 : i32, i32
  }
  func.func @transform_3(%arg0: i32) -> (i32, i32, i32) {
    %c0_i32 = arith.constant 0 : i32
    %c0_i32_0 = arith.constant 0 : i32
    %c0_i32_1 = arith.constant 0 : i32
    %c0_i32_2 = arith.constant 0 : i32
    return %c0_i32, %c0_i32_0, %c0_i32_1 : i32, i32, i32
  }
  func.func @transform_4(%arg0: i32) -> (i32, i32) {
    %c0_i32 = arith.constant 0 : i32
    %c0_i32_0 = arith.constant 0 : i32
    %c0_i32_1 = arith.constant 0 : i32
    return %c0_i32, %c0_i32_0 : i32, i32
  }
  func.func @transform_5(%arg0: i32) -> (i32, i32, i32) {
    %c0_i32 = arith.constant 0 : i32
    %c0_i32_0 = arith.constant 0 : i32
    %c0_i32_1 = arith.constant 0 : i32
    return %arg0, %c0_i32, %c0_i32_0 : i32, i32, i32
  }
}

</mosaic_0001>

<llo_original>
// kernel: basic_block_forward.1
$region0: #{basic_block_forward.1}
  #allocation0 [shape = 'u32[]', space=smem, size = 0x4, offset = 0x4, fixed_abs, tag = 'smem constant byte address 0x4 - core index']
  #allocation1 [shape = 'u32[144,128]{1,0:T(1,128)}', space=vmem, size = 0x12000, scoped, tag = 'internal scratch']
  #allocation2 [shape = 'bf16[18,16,384]{2,1,0:T(16,128)(2,1)}', space=vmem, size = 0x36000, scoped, tag = 'scratch operand']
  %s0 = inlined_call_operand.vmem [shape: bf16[2,256,128], index: 0, kind: input, shape index: {}]
  %s1 = inlined_call_operand.vmem [shape: bf16[128,128], index: 1, kind: input, shape index: {}]
  %s2 = inlined_call_operand.vmem [shape: f32[1,128], index: 2, kind: input, shape index: {}]
  %s3 = inlined_call_operand.vmem [shape: bf16[3,384,128], index: 3, kind: input, shape index: {}]
  %s4 = inlined_call_operand.vmem [shape: f32[1,128], index: 4, kind: input, shape index: {}]
  %s5 = inlined_call_operand.vmem [shape: f32[2,256,128], index: 5, kind: output, shape index: {}]
  %s6 = sld [smem:[#allocation0]]
  $region53: #{basic_block_forward.1} parent=0
    _
  %s8 = ssub.s32 1, %s6
  %s9 = scalar_select 0, %s8, %s6
  loop: start=0, step=1, limit=4
  $region2: #{basic_block_forward.1} parent=0 // loop_pre_header
    _
  $region3: #{basic_block_forward.1} parent=0 // loop_header
    %s11 = sphi 0, %s15
    %p12 = scmp.ge.s32.totalorder %s11, 4
    %s21 = sphi 0, %s23
    %s24 = sphi 0, %s21
    %s25 = sphi 0, %s24
    %s41 = sphi 0, %s25
    %s45 = sphi 0, %s45
    %s47 = sphi 0, %s45
    %s48 = sphi 0, %s47
    %s62 = sphi 0, %s48
    %s66 = sphi 0, %s66
    %s68 = sphi 0, %s66
    %s69 = sphi 0, %s68
    %s83 = sphi 0, %s69
    %s87 = sphi 0, %s87
    %s89 = sphi 0, %s87
    %s90 = sphi 0, %s89
    %s104 = sphi 0, %s90
    %s108 = sphi 0, %s108
    %s110 = sphi 0, %s108
    %s111 = sphi 0, %s110
    %s125 = sphi 0, %s111
    %s131 = sphi 0, %s133
    %s134 = sphi 0, %s131
    %s135 = sphi 0, %s134
    %s151 = sphi 0, %s135
  $region4: #{basic_block_forward.1} parent=0 // loop_header_branch
    %14 = sbr.rel (%p12) target = $region8
  $region5: #{basic_block_forward.1} parent=0 // loop_body
    %s16 = ssub.s32 %s11, 1
    %s17 = ssub.s32 %s11, 2
    %s18 = sadd.s32 %s11, 1
    %s19 = ssub.s32 %s11, %s18
    %p20 = scmp.eq.s32.totalorder %s19, 0
    %s22 = sadd.s32 %s21, 1
    %s23 = scalar_select %p20, %s21, %s22
    %p26 = pneg %p20
    %p27 = scmp.eq.s32.totalorder %s11, 1
    %p28 = por %p26, %p27
    %p29 = scmp.ne.s32.totalorder %s21, %s24
    %p30 = scmp.eq.s32.totalorder %s11, 0
    %p31 = por %p29, %p30
    %p32 = scmp.ne.s32.totalorder %s21, %s24
    %p33 = scmp.eq.s32.totalorder %s16, 1
    %p34 = por %p32, %p33
    %p35 = scmp.ne.s32.totalorder %s24, %s25
    %p36 = scmp.eq.s32.totalorder %s16, 0
    %p37 = por %p35, %p36
    %p38 = scmp.ne.s32.totalorder %s24, %s25
    %p39 = scmp.eq.s32.totalorder %s17, 1
    %p40 = por %p38, %p39
    %p42 = scmp.ne.s32.totalorder %s25, %s41
    %p43 = scmp.eq.s32.totalorder %s17, 0
    %p44 = por %p42, %p43
    %s46 = sadd.s32 %s45, 1
    %p49 = scmp.eq.s32.totalorder %s11, 1
    %p50 = scmp.ne.s32.totalorder %s45, %s47
    %p51 = scmp.eq.s32.totalorder %s11, 0
    %p52 = por %p50, %p51
    %p53 = scmp.ne.s32.totalorder %s45, %s47
    %p54 = scmp.eq.s32.totalorder %s16, 1
    %p55 = por %p53, %p54
    %p56 = scmp.ne.s32.totalorder %s47, %s48
    %p57 = scmp.eq.s32.totalorder %s16, 0
    %p58 = por %p56, %p57
    %p59 = scmp.ne.s32.totalorder %s47, %s48
    %p60 = scmp.eq.s32.totalorder %s17, 1
    %p61 = por %p59, %p60
    %p63 = scmp.ne.s32.totalorder %s48, %s62
    %p64 = scmp.eq.s32.totalorder %s17, 0
    %p65 = por %p63, %p64
    %s67 = sadd.s32 %s66, 1
    %p70 = scmp.eq.s32.totalorder %s11, 1
    %p71 = scmp.ne.s32.totalorder %s66, %s68
    %p72 = scmp.eq.s32.totalorder %s11, 0
    %p73 = por %p71, %p72
    %p74 = scmp.ne.s32.totalorder %s66, %s68
    %p75 = scmp.eq.s32.totalorder %s16, 1
    %p76 = por %p74, %p75
    %p77 = scmp.ne.s32.totalorder %s68, %s69
    %p78 = scmp.eq.s32.totalorder %s16, 0
    %p79 = por %p77, %p78
    %p80 = scmp.ne.s32.totalorder %s68, %s69
    %p81 = scmp.eq.s32.totalorder %s17, 1
    %p82 = por %p80, %p81
    %p84 = scmp.ne.s32.totalorder %s69, %s83
    %p85 = scmp.eq.s32.totalorder %s17, 0
    %p86 = por %p84, %p85
    %s88 = sadd.s32 %s87, 1
    %p91 = scmp.eq.s32.totalorder %s11, 1
    %p92 = scmp.ne.s32.totalorder %s87, %s89
    %p93 = scmp.eq.s32.totalorder %s11, 0
    %p94 = por %p92, %p93
    %p95 = scmp.ne.s32.totalorder %s87, %s89
    %p96 = scmp.eq.s32.totalorder %s16, 1
    %p97 = por %p95, %p96
    %p98 = scmp.ne.s32.totalorder %s89, %s90
    %p99 = scmp.eq.s32.totalorder %s16, 0
    %p100 = por %p98, %p99
    %p101 = scmp.ne.s32.totalorder %s89, %s90
    %p102 = scmp.eq.s32.totalorder %s17, 1
    %p103 = por %p101, %p102
    %p105 = scmp.ne.s32.totalorder %s90, %s104
    %p106 = scmp.eq.s32.totalorder %s17, 0
    %p107 = por %p105, %p106
    %s109 = sadd.s32 %s108, 1
    %p112 = scmp.eq.s32.totalorder %s11, 1
    %p113 = scmp.ne.s32.totalorder %s108, %s110
    %p114 = scmp.eq.s32.totalorder %s11, 0
    %p115 = por %p113, %p114
    %p116 = scmp.ne.s32.totalorder %s108, %s110
    %p117 = scmp.eq.s32.totalorder %s16, 1
    %p118 = por %p116, %p117
    %p119 = scmp.ne.s32.totalorder %s110, %s111
    %p120 = scmp.eq.s32.totalorder %s16, 0
    %p121 = por %p119, %p120
    %p122 = scmp.ne.s32.totalorder %s110, %s111
    %p123 = scmp.eq.s32.totalorder %s17, 1
    %p124 = por %p122, %p123
    %p126 = scmp.ne.s32.totalorder %s111, %s125
    %p127 = scmp.eq.s32.totalorder %s17, 0
    %p128 = por %p126, %p127
    %s129 = ssub.s32 %s11, %s18
    %p130 = scmp.eq.s32.totalorder %s129, 0
    %s132 = sadd.s32 %s131, 1
    %s133 = scalar_select %p130, %s131, %s132
    %p136 = pneg %p130
    %p137 = scmp.eq.s32.totalorder %s11, 1
    %p138 = por %p136, %p137
    %p139 = scmp.ne.s32.totalorder %s131, %s134
    %p140 = scmp.eq.s32.totalorder %s11, 0
    %p141 = por %p139, %p140
    %p142 = scmp.ne.s32.totalorder %s131, %s134
    %p143 = scmp.eq.s32.totalorder %s16, 1
    %p144 = por %p142, %p143
    %p145 = scmp.ne.s32.totalorder %s134, %s135
    %p146 = scmp.eq.s32.totalorder %s16, 0
    %p147 = por %p145, %p146
    %p148 = scmp.ne.s32.totalorder %s134, %s135
    %p149 = scmp.eq.s32.totalorder %s17, 1
    %p150 = por %p148, %p149
    %p152 = scmp.ne.s32.totalorder %s135, %s151
    %p153 = scmp.eq.s32.totalorder %s17, 0
    %p154 = por %p152, %p153
    %p155 = scmp.le.s32.totalorder 1, %s11
    %p156 = scmp.lt.s32.totalorder %s11, 3
    %p157 = pnand %p155, %p156
    %p158 = pneg %p157
    // Predicated region
    $region9: #{basic_block_forward.1} parent=5 // pred_check
      _
    $region10: #{basic_block_forward.1} parent=5 // pred_check_branch
      %160 = sbr.rel (%p157) target = $region12
    $region11: #{basic_block_forward.1} parent=5 // pred_region
      %s161 = ssub.s32 %s11, 1
      // Predicated region
      $region13: #{basic_block_forward.1} parent=11 // pred_check
        %p162 = pneg %p58
      $region14: #{basic_block_forward.1} parent=11 // pred_check_branch
        %164 = sbr.rel (%p162) target = $region16
      $region15: #{basic_block_forward.1} parent=11 // pred_region
        _
      $region16: #{basic_block_forward.1} parent=11 // pred_fallthru
        _
      // Predicated region
      $region17: #{basic_block_forward.1} parent=11 // pred_check
        %p165 = pneg %p79
      $region18: #{basic_block_forward.1} parent=11 // pred_check_branch
        %167 = sbr.rel (%p165) target = $region20
      $region19: #{basic_block_forward.1} parent=11 // pred_region
        _
      $region20: #{basic_block_forward.1} parent=11 // pred_fallthru
        _
      // Predicated region
      $region21: #{basic_block_forward.1} parent=11 // pred_check
        %p168 = pneg %p100
      $region22: #{basic_block_forward.1} parent=11 // pred_check_branch
        %170 = sbr.rel (%p168) target = $region24
      $region23: #{basic_block_forward.1} parent=11 // pred_region
        _
      $region24: #{basic_block_forward.1} parent=11 // pred_fallthru
        _
      // Predicated region
      $region25: #{basic_block_forward.1} parent=11 // pred_check
        %p171 = pneg %p121
      $region26: #{basic_block_forward.1} parent=11 // pred_check_branch
        %173 = sbr.rel (%p171) target = $region28
      $region27: #{basic_block_forward.1} parent=11 // pred_region
        _
      $region28: #{basic_block_forward.1} parent=11 // pred_fallthru
        _
    $region12: #{basic_block_forward.1} parent=5 // pred_fallthru
      _
    %p174 = scmp.lt.s32.totalorder %s11, 2
    // Predicated region
    $region29: #{basic_block_forward.1} parent=5 // pred_check
      %p175 = pneg %p174
    $region30: #{basic_block_forward.1} parent=5 // pred_check_branch
      %177 = sbr.rel (%p175) target = $region32
    $region31: #{basic_block_forward.1} parent=5 // pred_region
      // Predicated region
      $region33: #{basic_block_forward.1} parent=31 // pred_check
        %p178 = pneg %p31
      $region34: #{basic_block_forward.1} parent=31 // pred_check_branch
        %180 = sbr.rel (%p178) target = $region36
      $region35: #{basic_block_forward.1} parent=31 // pred_region
        %p181 = scmp.lt.s32.totalorder %s11, 1
        %s182 = scalar_select %p181, %s11, 1
        %s183 = smul.addr %s182, 32
        %s184 = smul.addr %s183, 4
        %s185 = scalar_lea.vmem %s0, %s184
      $region36: #{basic_block_forward.1} parent=31 // pred_fallthru
        _
    $region32: #{basic_block_forward.1} parent=5 // pred_fallthru
      _
    %p186 = scmp.le.s32.totalorder 1, %s11
    %p187 = scmp.lt.s32.totalorder %s11, 3
    %p188 = pnand %p186, %p187
    %p189 = pneg %p188
    // Predicated region
    $region37: #{basic_block_forward.1} parent=5 // pred_check
      _
    $region38: #{basic_block_forward.1} parent=5 // pred_check_branch
      %191 = sbr.rel (%p188) target = $region40
    $region39: #{basic_block_forward.1} parent=5 // pred_region
      %s192 = ssub.s32 %s11, 1
      %p193 = scmp.lt.s32.totalorder %s16, 1
      %s194 = scalar_select %p193, %s16, 1
      %s195 = smul.addr %s194, 32
      %s196 = smul.addr %s195, 4
      %s197 = scalar_lea.vmem %s0, %s196
      %p198 = pneg %p37
      %p199 = pneg %p34
      %p200 = pneg %p58
      %p201 = pneg %p55
      %p202 = pneg %p79
      %p203 = pneg %p76
      %p204 = pneg %p100
      %p205 = pneg %p97
      %p206 = pneg %p121
      %p207 = pneg %p118
      %p208 = pneg %p147
      %p209 = pneg %p144
      %p210 = scmp.lt.s32.totalorder %s16, 1
      %s211 = scalar_select %p210, %s16, 1
      %s212 = smul.addr %s211, 32
      %s213 = smul.addr %s212, 8
      %s214 = scalar_lea.vmem %s5, %s213
      %p215 = scmp.lt.s32.totalorder %s16, 1
      %s216 = scalar_select %p215, %s16, 1
      %s217 = smul.addr %s216, 32
      %s218 = smul.addr %s217, 4
      %s219 = scalar_lea.vmem %s0, %s218
      %p220 = scmp.lt.s32.totalorder %s16, 1
      %s221 = scalar_select %p220, %s16, 1
      %s222 = smul.addr %s221, 32
      %s223 = smul.addr %s222, 8
      %s224 = scalar_lea.vmem %s5, %s223
      %v226 = vld [vmem:[%s219] sm:$0xf]
      %v227 = vld [vmem:[%s219 + $0x4] sm:$0xf]
      %v228 = vld [vmem:[%s219 + $0x8] sm:$0xf]
      %v229 = vld [vmem:[%s219 + $0xc] sm:$0xf]
      %v230 = vld [vmem:[%s219 + $0x10] sm:$0xf]
      %v231 = vld [vmem:[%s219 + $0x14] sm:$0xf]
      %v232 = vld [vmem:[%s219 + $0x18] sm:$0xf]
      %v233 = vld [vmem:[%s219 + $0x1c] sm:$0xf]
      %v234 = vld [vmem:[%s219 + $0x20] sm:$0xf]
      %v235 = vld [vmem:[%s219 + $0x24] sm:$0xf]
      %v236 = vld [vmem:[%s219 + $0x28] sm:$0xf]
      %v237 = vld [vmem:[%s219 + $0x2c] sm:$0xf]
      %v238 = vld [vmem:[%s219 + $0x30] sm:$0xf]
      %v239 = vld [vmem:[%s219 + $0x34] sm:$0xf]
      %v240 = vld [vmem:[%s219 + $0x38] sm:$0xf]
      %v241 = vld [vmem:[%s219 + $0x3c] sm:$0xf]
      %v242 = vld [vmem:[%s219 + $0x40] sm:$0xf]
      %v243 = vld [vmem:[%s219 + $0x44] sm:$0xf]
      %v244 = vld [vmem:[%s219 + $0x48] sm:$0xf]
      %v245 = vld [vmem:[%s219 + $0x4c] sm:$0xf]
      %v246 = vld [vmem:[%s219 + $0x50] sm:$0xf]
      %v247 = vld [vmem:[%s219 + $0x54] sm:$0xf]
      %v248 = vld [vmem:[%s219 + $0x58] sm:$0xf]
      %v249 = vld [vmem:[%s219 + $0x5c] sm:$0xf]
      %v250 = vld [vmem:[%s219 + $0x60] sm:$0xf]
      %v251 = vld [vmem:[%s219 + $0x64] sm:$0xf]
      %v252 = vld [vmem:[%s219 + $0x68] sm:$0xf]
      %v253 = vld [vmem:[%s219 + $0x6c] sm:$0xf]
      %v254 = vld [vmem:[%s219 + $0x70] sm:$0xf]
      %v255 = vld [vmem:[%s219 + $0x74] sm:$0xf]
      %v256 = vld [vmem:[%s219 + $0x78] sm:$0xf]
      %v257 = vld [vmem:[%s219 + $0x7c] sm:$0xf]
      %v258 = vld [vmem:[%s1] sm:$0xf]
      %v259 = vld [vmem:[%s1 + $0x4] sm:$0xf]
      %v260 = vld [vmem:[%s1 + $0x8] sm:$0xf]
      %v261 = vld [vmem:[%s1 + $0xc] sm:$0xf]
      %v262 = vld [vmem:[%s1 + $0x10] sm:$0xf]
      %v263 = vld [vmem:[%s1 + $0x14] sm:$0xf]
      %v264 = vld [vmem:[%s1 + $0x18] sm:$0xf]
      %v265 = vld [vmem:[%s1 + $0x1c] sm:$0xf]
      %v266 = vld [vmem:[%s1 + $0x20] sm:$0xf]
      %v267 = vld [vmem:[%s1 + $0x24] sm:$0xf]
      %v268 = vld [vmem:[%s1 + $0x28] sm:$0xf]
      %v269 = vld [vmem:[%s1 + $0x2c] sm:$0xf]
      %v270 = vld [vmem:[%s1 + $0x30] sm:$0xf]
      %v271 = vld [vmem:[%s1 + $0x34] sm:$0xf]
      %v272 = vld [vmem:[%s1 + $0x38] sm:$0xf]
      %v273 = vld [vmem:[%s1 + $0x3c] sm:$0xf]
      %v274 = vld [vmem:[%s2] sm:$0x1]
      %v276 = vlaneseq
      %v277 = vshrl.u32 %v276, 7
      %v278 = vsub.s32 0, %v277
      %v279 = vrot.slane %v274, %v278
      %v313 = vunpack.c.l.b16 %v226
      %v314 = vunpack.c.l.b16 %v227
      %v315 = vunpack.c.l.b16 %v228
      %v316 = vunpack.c.l.b16 %v229
      %v317 = vunpack.c.l.b16 %v230
      %v318 = vunpack.c.l.b16 %v231
      %v319 = vunpack.c.l.b16 %v232
      %v320 = vunpack.c.l.b16 %v233
      %v321 = vunpack.c.l.b16 %v234
      %v322 = vunpack.c.l.b16 %v235
      %v323 = vunpack.c.l.b16 %v236
      %v324 = vunpack.c.l.b16 %v237
      %v325 = vunpack.c.l.b16 %v238
      %v326 = vunpack.c.l.b16 %v239
      %v327 = vunpack.c.l.b16 %v240
      %v328 = vunpack.c.l.b16 %v241
      %v329 = vunpack.c.l.b16 %v242
      %v330 = vunpack.c.l.b16 %v243
      %v331 = vunpack.c.l.b16 %v244
      %v332 = vunpack.c.l.b16 %v245
      %v333 = vunpack.c.l.b16 %v246
      %v334 = vunpack.c.l.b16 %v247
      %v335 = vunpack.c.l.b16 %v248
      %v336 = vunpack.c.l.b16 %v249
      %v337 = vunpack.c.l.b16 %v250
      %v338 = vunpack.c.l.b16 %v251
      %v339 = vunpack.c.l.b16 %v252
      %v340 = vunpack.c.l.b16 %v253
      %v341 = vunpack.c.l.b16 %v254
      %v342 = vunpack.c.l.b16 %v255
      %v343 = vunpack.c.l.b16 %v256
      %v344 = vunpack.c.l.b16 %v257
      %v345 = vpack.c.b16 %v314, %v313
      %v346 = vpack.c.b16 %v316, %v315
      %v347 = vpack.c.b16 %v318, %v317
      %v348 = vpack.c.b16 %v320, %v319
      %v349 = vpack.c.b16 %v322, %v321
      %v350 = vpack.c.b16 %v324, %v323
      %v351 = vpack.c.b16 %v326, %v325
      %v352 = vpack.c.b16 %v328, %v327
      %v353 = vpack.c.b16 %v330, %v329
      %v354 = vpack.c.b16 %v332, %v331
      %v355 = vpack.c.b16 %v334, %v333
      %v356 = vpack.c.b16 %v336, %v335
      %v357 = vpack.c.b16 %v338, %v337
      %v358 = vpack.c.b16 %v340, %v339
      %v359 = vpack.c.b16 %v342, %v341
      %v360 = vpack.c.b16 %v344, %v343
      %v393 = vunpack.c.l.b16 %v258
      %v394 = vunpack.c.l.b16 %v259
      %v395 = vunpack.c.l.b16 %v260
      %v396 = vunpack.c.l.b16 %v261
      %v397 = vunpack.c.l.b16 %v262
      %v398 = vunpack.c.l.b16 %v263
      %v399 = vunpack.c.l.b16 %v264
      %v400 = vunpack.c.l.b16 %v265
      %v401 = vunpack.c.l.b16 %v266
      %v402 = vunpack.c.l.b16 %v267
      %v403 = vunpack.c.l.b16 %v268
      %v404 = vunpack.c.l.b16 %v269
      %v405 = vunpack.c.l.b16 %v270
      %v406 = vunpack.c.l.b16 %v271
      %v407 = vunpack.c.l.b16 %v272
      %v408 = vunpack.c.l.b16 %v273
      %v409 = vpack.c.b16 %v394, %v393
      %v410 = vpack.c.b16 %v396, %v395
      %v411 = vpack.c.b16 %v398, %v397
      %v412 = vpack.c.b16 %v400, %v399
      %v413 = vpack.c.b16 %v402, %v401
      %v414 = vpack.c.b16 %v404, %v403
      %v415 = vpack.c.b16 %v406, %v405
      %v416 = vpack.c.b16 %v408, %v407
      %425 = vmatprep.subr.bf16.mxu0 0
      %426 = vmatpush1.bf16.msra.mxu0 %v409
      %427 = vmatprep.subr.bf16.mxu0 0
      %428 = vmatpush1.bf16.msra.mxu0 %v410
      %429 = vmatprep.subr.bf16.mxu0 0
      %430 = vmatpush1.bf16.msra.mxu0 %v411
      %431 = vmatprep.subr.bf16.mxu0 0
      %432 = vmatpush1.bf16.msra.mxu0 %v412
      %433 = vmatprep.subr.bf16.mxu0 0
      %434 = vmatpush1.bf16.msra.mxu0 %v413
      %435 = vmatprep.subr.bf16.mxu0 0
      %436 = vmatpush1.bf16.msra.mxu0 %v414
      %437 = vmatprep.subr.bf16.mxu0 0
      %438 = vmatpush1.bf16.msra.mxu0 %v415
      %439 = vmatprep.subr.bf16.mxu0 0
      %440 = vmatpush1.bf16.msra.mxu0 %v416
      %441 = vmatprep.subr.bf16.mxu0 0
      %442 = vmatpush1.bf16.msra.mxu0 0
      %443 = vmatprep.subr.bf16.mxu0 0
      %444 = vmatpush1.bf16.msra.mxu0 0
      %445 = vmatprep.subr.bf16.mxu0 0
      %446 = vmatpush1.bf16.msra.mxu0 0
      %447 = vmatprep.subr.bf16.mxu0 0
      %448 = vmatpush1.bf16.msra.mxu0 0
      %449 = vmatprep.subr.bf16.mxu0 0
      %450 = vmatpush1.bf16.msra.mxu0 0
      %451 = vmatprep.subr.bf16.mxu0 0
      %452 = vmatpush1.bf16.msra.mxu0 0
      %453 = vmatprep.subr.bf16.mxu0 0
      %454 = vmatpush1.bf16.msra.mxu0 0
      %455 = vmatprep.subr.bf16.mxu0 0
      %456 = vmatpush1.bf16.msra.mxu0 0
      %457 = vmatprep.mubr.bf16.mxu0 0
      %458 = vmatmul.mubr.bf16.gmra.mrb[0].mxu0 %v345
      %v459 = vpop.f32.mrb[0].mxu0
      %v460 = vadd.f32 %v279, %v459
      %v461 = vpop.f32.mrb[0].mxu0
      %v462 = vpop.f32.mrb[0].mxu0
      %v463 = vadd.f32 %v279, %v462
      %v464 = vpop.f32.mrb[0].mxu0
      %465 = vmatprep.mubr.bf16.mxu0 0
      %466 = vmatmul.mubr.bf16.gmra.mrb[0].mxu0 %v346
      %v467 = vpop.f32.mrb[0].mxu0
      %v468 = vadd.f32 %v279, %v467
      %v469 = vpop.f32.mrb[0].mxu0
      %v470 = vpop.f32.mrb[0].mxu0
      %v471 = vadd.f32 %v279, %v470
      %v472 = vpop.f32.mrb[0].mxu0
      %473 = vmatprep.mubr.bf16.mxu0 0
      %474 = vmatmul.mubr.bf16.gmra.mrb[0].mxu0 %v347
      %v475 = vpop.f32.mrb[0].mxu0
      %v476 = vadd.f32 %v279, %v475
      %v477 = vpop.f32.mrb[0].mxu0
      %v478 = vpop.f32.mrb[0].mxu0
      %v479 = vadd.f32 %v279, %v478
      %v480 = vpop.f32.mrb[0].mxu0
      %481 = vmatprep.mubr.bf16.mxu0 0
      %482 = vmatmul.mubr.bf16.gmra.mrb[0].mxu0 %v348
      %v483 = vpop.f32.mrb[0].mxu0
      %v484 = vadd.f32 %v279, %v483
      %v485 = vpop.f32.mrb[0].mxu0
      %v486 = vpop.f32.mrb[0].mxu0
      %v487 = vadd.f32 %v279, %v486
      %v488 = vpop.f32.mrb[0].mxu0
      %489 = vmatprep.mubr.bf16.mxu0 0
      %490 = vmatmul.mubr.bf16.gmra.mrb[0].mxu0 %v349
      %v491 = vpop.f32.mrb[0].mxu0
      %v492 = vadd.f32 %v279, %v491
      %v493 = vpop.f32.mrb[0].mxu0
      %v494 = vpop.f32.mrb[0].mxu0
      %v495 = vadd.f32 %v279, %v494
      %v496 = vpop.f32.mrb[0].mxu0
      %497 = vmatprep.mubr.bf16.mxu0 0
      %498 = vmatmul.mubr.bf16.gmra.mrb[0].mxu0 %v350
      %v499 = vpop.f32.mrb[0].mxu0
      %v500 = vadd.f32 %v279, %v499
      %v501 = vpop.f32.mrb[0].mxu0
      %v502 = vpop.f32.mrb[0].mxu0
      %v503 = vadd.f32 %v279, %v502
      %v504 = vpop.f32.mrb[0].mxu0
      %505 = vmatprep.mubr.bf16.mxu0 0
      %506 = vmatmul.mubr.bf16.gmra.mrb[0].mxu0 %v351
      %v507 = vpop.f32.mrb[0].mxu0
      %v508 = vadd.f32 %v279, %v507
      %v509 = vpop.f32.mrb[0].mxu0
      %v510 = vpop.f32.mrb[0].mxu0
      %v511 = vadd.f32 %v279, %v510
      %v512 = vpop.f32.mrb[0].mxu0
      %513 = vmatprep.mubr.bf16.mxu0 0
      %514 = vmatmul.mubr.bf16.gmra.mrb[0].mxu0 %v352
      %v515 = vpop.f32.mrb[0].mxu0
      %v516 = vadd.f32 %v279, %v515
      %v517 = vpop.f32.mrb[0].mxu0
      %v518 = vpop.f32.mrb[0].mxu0
      %v519 = vadd.f32 %v279, %v518
      %v520 = vpop.f32.mrb[0].mxu0
      %521 = vmatprep.mubr.bf16.mxu0 0
      %522 = vmatmul.mubr.bf16.gmra.mrb[0].mxu0 %v353
      %v523 = vpop.f32.mrb[0].mxu0
      %v524 = vadd.f32 %v279, %v523
      %v525 = vpop.f32.mrb[0].mxu0
      %v526 = vpop.f32.mrb[0].mxu0
      %v527 = vadd.f32 %v279, %v526
      %v528 = vpop.f32.mrb[0].mxu0
      %529 = vmatprep.mubr.bf16.mxu0 0
      %530 = vmatmul.mubr.bf16.gmra.mrb[0].mxu0 %v354
      %v531 = vpop.f32.mrb[0].mxu0
      %v532 = vadd.f32 %v279, %v531
      %v533 = vpop.f32.mrb[0].mxu0
      %v534 = vpop.f32.mrb[0].mxu0
      %v535 = vadd.f32 %v279, %v534
      %v536 = vpop.f32.mrb[0].mxu0
      %537 = vmatprep.mubr.bf16.mxu0 0
      %538 = vmatmul.mubr.bf16.gmra.mrb[0].mxu0 %v355
      %v539 = vpop.f32.mrb[0].mxu0
      %v540 = vadd.f32 %v279, %v539
      %v541 = vpop.f32.mrb[0].mxu0
      %v542 = vpop.f32.mrb[0].mxu0
      %v543 = vadd.f32 %v279, %v542
      %v544 = vpop.f32.mrb[0].mxu0
      %545 = vmatprep.mubr.bf16.mxu0 0
      %546 = vmatmul.mubr.bf16.gmra.mrb[0].mxu0 %v356
      %v547 = vpop.f32.mrb[0].mxu0
      %v548 = vadd.f32 %v279, %v547
      %v549 = vpop.f32.mrb[0].mxu0
      %v550 = vpop.f32.mrb[0].mxu0
      %v551 = vadd.f32 %v279, %v550
      %v552 = vpop.f32.mrb[0].mxu0
      %553 = vmatprep.mubr.bf16.mxu0 0
      %554 = vmatmul.mubr.bf16.gmra.mrb[0].mxu0 %v357
      %v555 = vpop.f32.mrb[0].mxu0
      %v556 = vadd.f32 %v279, %v555
      %v557 = vpop.f32.mrb[0].mxu0
      %v558 = vpop.f32.mrb[0].mxu0
      %v559 = vadd.f32 %v279, %v558
      %v560 = vpop.f32.mrb[0].mxu0
      %561 = vmatprep.mubr.bf16.mxu0 0
      %562 = vmatmul.mubr.bf16.gmra.mrb[0].mxu0 %v358
      %v563 = vpop.f32.mrb[0].mxu0
      %v564 = vadd.f32 %v279, %v563
      %v565 = vpop.f32.mrb[0].mxu0
      %v566 = vpop.f32.mrb[0].mxu0
      %v567 = vadd.f32 %v279, %v566
      %v568 = vpop.f32.mrb[0].mxu0
      %569 = vmatprep.mubr.bf16.mxu0 0
      %570 = vmatmul.mubr.bf16.gmra.mrb[0].mxu0 %v359
      %v571 = vpop.f32.mrb[0].mxu0
      %v572 = vadd.f32 %v279, %v571
      %v573 = vpop.f32.mrb[0].mxu0
      %v574 = vpop.f32.mrb[0].mxu0
      %v575 = vadd.f32 %v279, %v574
      %v576 = vpop.f32.mrb[0].mxu0
      %577 = vmatprep.mubr.bf16.mxu0 0
      %578 = vmatmul.mubr.bf16.gmra.mrb[0].mxu0 %v360
      %v579 = vpop.f32.mrb[0].mxu0
      %v580 = vadd.f32 %v279, %v579
      %v581 = vpop.f32.mrb[0].mxu0
      %v582 = vpop.f32.mrb[0].mxu0
      %v583 = vadd.f32 %v279, %v582
      %v584 = vpop.f32.mrb[0].mxu0
      %585 = vdwg.mxu0
      %v586 = vmax.f32 %v460, 0.0
      %v587 = vmax.f32 %v463, 0.0
      %v588 = vmax.f32 %v468, 0.0
      %v589 = vmax.f32 %v471, 0.0
      %v590 = vmax.f32 %v476, 0.0
      %v591 = vmax.f32 %v479, 0.0
      %v592 = vmax.f32 %v484, 0.0
      %v593 = vmax.f32 %v487, 0.0
      %v594 = vmax.f32 %v492, 0.0
      %v595 = vmax.f32 %v495, 0.0
      %v596 = vmax.f32 %v500, 0.0
      %v597 = vmax.f32 %v503, 0.0
      %v598 = vmax.f32 %v508, 0.0
      %v599 = vmax.f32 %v511, 0.0
      %v600 = vmax.f32 %v516, 0.0
      %v601 = vmax.f32 %v519, 0.0
      %v602 = vmax.f32 %v524, 0.0
      %v603 = vmax.f32 %v527, 0.0
      %v604 = vmax.f32 %v532, 0.0
      %v605 = vmax.f32 %v535, 0.0
      %v606 = vmax.f32 %v540, 0.0
      %v607 = vmax.f32 %v543, 0.0
      %v608 = vmax.f32 %v548, 0.0
      %v609 = vmax.f32 %v551, 0.0
      %v610 = vmax.f32 %v556, 0.0
      %v611 = vmax.f32 %v559, 0.0
      %v612 = vmax.f32 %v564, 0.0
      %v613 = vmax.f32 %v567, 0.0
      %v614 = vmax.f32 %v572, 0.0
      %v615 = vmax.f32 %v575, 0.0
      %v616 = vmax.f32 %v580, 0.0
      %v617 = vmax.f32 %v583, 0.0
      %v618 = vpack.c.bf16 %v587, %v586
      %v619 = vpack.c.bf16 %v589, %v588
      %v620 = vpack.c.bf16 %v591, %v590
      %v621 = vpack.c.bf16 %v593, %v592
      %v622 = vpack.c.bf16 %v595, %v594
      %v623 = vpack.c.bf16 %v597, %v596
      %v624 = vpack.c.bf16 %v599, %v598
      %v625 = vpack.c.bf16 %v601, %v600
      %v626 = vpack.c.bf16 %v603, %v602
      %v627 = vpack.c.bf16 %v605, %v604
      %v628 = vpack.c.bf16 %v607, %v606
      %v629 = vpack.c.bf16 %v609, %v608
      %v630 = vpack.c.bf16 %v611, %v610
      %v631 = vpack.c.bf16 %v613, %v612
      %v632 = vpack.c.bf16 %v615, %v614
      %v633 = vpack.c.bf16 %v617, %v616
      %634 = vst [vmem:[#allocation2] sm:$0xff] 0
      %635 = vst [vmem:[#allocation2 + $0x8] sm:$0xff] 0
      %636 = vst [vmem:[#allocation2 + $0x10] sm:$0xff] 0
      %s637 = scalar_lea.vmem [#allocation2], 408
      %638 = vst [vmem:[%s637] sm:$0xff] 0
      %639 = vst [vmem:[%s637 + $0x8] sm:$0xff] 0
      %640 = vst [vmem:[%s637 + $0x10] sm:$0xff] 0
      %v642 = vshrl.u32 %v618, 16
      %v644 = vrot.slane %v642, 7
      %v645 = vshll.u32 %v618, 16
      %v647 = vor.u32 %v644, %v645
      %v649 = vshrl.u32 %v619, 16
      %v651 = vrot.slane %v649, 7
      %v652 = vshll.u32 %v619, 16
      %v654 = vor.u32 %v651, %v652
      %v656 = vshrl.u32 %v620, 16
      %v658 = vrot.slane %v656, 7
      %v659 = vshll.u32 %v620, 16
      %v661 = vor.u32 %v658, %v659
      %v663 = vshrl.u32 %v621, 16
      %v665 = vrot.slane %v663, 7
      %v666 = vshll.u32 %v621, 16
      %v668 = vor.u32 %v665, %v666
      %v670 = vshrl.u32 %v622, 16
      %v672 = vrot.slane %v670, 7
      %v673 = vshll.u32 %v622, 16
      %v675 = vor.u32 %v672, %v673
      %v677 = vshrl.u32 %v623, 16
      %v679 = vrot.slane %v677, 7
      %v680 = vshll.u32 %v623, 16
      %v682 = vor.u32 %v679, %v680
      %v684 = vshrl.u32 %v624, 16
      %v686 = vrot.slane %v684, 7
      %v687 = vshll.u32 %v624, 16
      %v689 = vor.u32 %v686, %v687
      %v691 = vshrl.u32 %v625, 16
      %v693 = vrot.slane %v691, 7
      %v694 = vshll.u32 %v625, 16
      %v696 = vor.u32 %v693, %v694
      %v698 = vshrl.u32 %v626, 16
      %v700 = vrot.slane %v698, 7
      %v701 = vshll.u32 %v626, 16
      %v703 = vor.u32 %v700, %v701
      %v705 = vshrl.u32 %v627, 16
      %v707 = vrot.slane %v705, 7
      %v708 = vshll.u32 %v627, 16
      %v710 = vor.u32 %v707, %v708
      %v712 = vshrl.u32 %v628, 16
      %v714 = vrot.slane %v712, 7
      %v715 = vshll.u32 %v628, 16
      %v717 = vor.u32 %v714, %v715
      %v719 = vshrl.u32 %v629, 16
      %v721 = vrot.slane %v719, 7
      %v722 = vshll.u32 %v629, 16
      %v724 = vor.u32 %v721, %v722
      %v726 = vshrl.u32 %v630, 16
      %v728 = vrot.slane %v726, 7
      %v729 = vshll.u32 %v630, 16
      %v731 = vor.u32 %v728, %v729
      %v733 = vshrl.u32 %v631, 16
      %v735 = vrot.slane %v733, 7
      %v736 = vshll.u32 %v631, 16
      %v738 = vor.u32 %v735, %v736
      %v740 = vshrl.u32 %v632, 16
      %v742 = vrot.slane %v740, 7
      %v743 = vshll.u32 %v632, 16
      %v745 = vor.u32 %v742, %v743
      %v747 = vshrl.u32 %v633, 16
      %v749 = vrot.slane %v747, 7
      %v750 = vshll.u32 %v633, 16
      %v752 = vor.u32 %v749, %v750
      %vm769 = vcmask 1040384
      %vm770 = vsmask.f32 256
      %vm771 = vmand %vm769, %vm770
      %v772 = vsel %vm771, 0, %v647
      %v773 = vsel %vm771, 0, %v654
      %v774 = vsel %vm771, 0, %v661
      %v775 = vsel %vm771, 0, %v668
      %v776 = vsel %vm771, 0, %v675
      %v777 = vsel %vm771, 0, %v682
      %v778 = vsel %vm771, 0, %v689
      %v779 = vsel %vm771, 0, %v696
      %v780 = vsel %vm771, 0, %v703
      %v781 = vsel %vm771, 0, %v710
      %v782 = vsel %vm771, 0, %v717
      %v783 = vsel %vm771, 0, %v724
      %v784 = vsel %vm771, 0, %v731
      %v785 = vsel %vm771, 0, %v738
      %v786 = vsel %vm771, 0, %v745
      %v787 = vsel %vm771, 0, %v752
      %v788 = vrot.slane %v645, 1
      %v789 = vor.u32 %v642, %v788
      %v790 = vrot.slane %v652, 1
      %v791 = vor.u32 %v649, %v790
      %v792 = vrot.slane %v659, 1
      %v793 = vor.u32 %v656, %v792
      %v794 = vrot.slane %v666, 1
      %v795 = vor.u32 %v663, %v794
      %v796 = vrot.slane %v673, 1
      %v797 = vor.u32 %v670, %v796
      %v798 = vrot.slane %v680, 1
      %v799 = vor.u32 %v677, %v798
      %v800 = vrot.slane %v687, 1
      %v801 = vor.u32 %v684, %v800
      %v802 = vrot.slane %v694, 1
      %v803 = vor.u32 %v691, %v802
      %v804 = vrot.slane %v701, 1
      %v805 = vor.u32 %v698, %v804
      %v806 = vrot.slane %v708, 1
      %v807 = vor.u32 %v705, %v806
      %v808 = vrot.slane %v715, 1
      %v809 = vor.u32 %v712, %v808
      %v810 = vrot.slane %v722, 1
      %v811 = vor.u32 %v719, %v810
      %v812 = vrot.slane %v729, 1
      %v813 = vor.u32 %v726, %v812
      %v814 = vrot.slane %v736, 1
      %v815 = vor.u32 %v733, %v814
      %v816 = vrot.slane %v743, 1
      %v817 = vor.u32 %v740, %v816
      %v818 = vrot.slane %v750, 1
      %v819 = vor.u32 %v747, %v818
      %vm836 = vcmask 1047552
      %vm837 = vsmask.f32 7424
      %vm838 = vmand %vm836, %vm837
      %v839 = vsel %vm838, %v789, 0
      %v840 = vsel %vm838, %v791, 0
      %v841 = vsel %vm838, %v793, 0
      %v842 = vsel %vm838, %v795, 0
      %v843 = vsel %vm838, %v797, 0
      %v844 = vsel %vm838, %v799, 0
      %v845 = vsel %vm838, %v801, 0
      %v846 = vsel %vm838, %v803, 0
      %v847 = vsel %vm838, %v805, 0
      %v848 = vsel %vm838, %v807, 0
      %v849 = vsel %vm838, %v809, 0
      %v850 = vsel %vm838, %v811, 0
      %v851 = vsel %vm838, %v813, 0
      %v852 = vsel %vm838, %v815, 0
      %v853 = vsel %vm838, %v817, 0
      %v854 = vsel %vm838, %v819, 0
      %s855 = scalar_lea.vmem [#allocation2], 24
      %856 = vst [vmem:[%s855] sm:$0xff] %v772
      %857 = vst [vmem:[%s855 + $0x18] sm:$0xff] %v773
      %858 = vst [vmem:[%s855 + $0x30] sm:$0xff] %v774
      %859 = vst [vmem:[%s855 + $0x48] sm:$0xff] %v775
      %860 = vst [vmem:[%s855 + $0x60] sm:$0xff] %v776
      %861 = vst [vmem:[%s855 + $0x78] sm:$0xff] %v777
      %862 = vst [vmem:[%s855 + $0x90] sm:$0xff] %v778
      %863 = vst [vmem:[%s855 + $0xa8] sm:$0xff] %v779
      %864 = vst [vmem:[%s855 + $0xc0] sm:$0xff] %v780
      %865 = vst [vmem:[%s855 + $0xd8] sm:$0xff] %v781
      %866 = vst [vmem:[%s855 + $0xf0] sm:$0xff] %v782
      %867 = vst [vmem:[%s855 + $0x108] sm:$0xff] %v783
      %868 = vst [vmem:[%s855 + $0x120] sm:$0xff] %v784
      %869 = vst [vmem:[%s855 + $0x138] sm:$0xff] %v785
      %870 = vst [vmem:[%s855 + $0x150] sm:$0xff] %v786
      %871 = vst [vmem:[%s855 + $0x168] sm:$0xff] %v787
      %872 = vst [vmem:[%s855 + $0x8] sm:$0xff] %v618
      %873 = vst [vmem:[%s855 + $0x20] sm:$0xff] %v619
      %874 = vst [vmem:[%s855 + $0x38] sm:$0xff] %v620
      %875 = vst [vmem:[%s855 + $0x50] sm:$0xff] %v621
      %876 = vst [vmem:[%s855 + $0x68] sm:$0xff] %v622
      %877 = vst [vmem:[%s855 + $0x80] sm:$0xff] %v623
      %878 = vst [vmem:[%s855 + $0x98] sm:$0xff] %v624
      %879 = vst [vmem:[%s855 + $0xb0] sm:$0xff] %v625
      %880 = vst [vmem:[%s855 + $0xc8] sm:$0xff] %v626
      %881 = vst [vmem:[%s855 + $0xe0] sm:$0xff] %v627
      %882 = vst [vmem:[%s855 + $0xf8] sm:$0xff] %v628
      %883 = vst [vmem:[%s855 + $0x110] sm:$0xff] %v629
      %884 = vst [vmem:[%s855 + $0x128] sm:$0xff] %v630
      %885 = vst [vmem:[%s855 + $0x140] sm:$0xff] %v631
      %886 = vst [vmem:[%s855 + $0x158] sm:$0xff] %v632
      %887 = vst [vmem:[%s855 + $0x170] sm:$0xff] %v633
      %888 = vst [vmem:[%s855 + $0x10] sm:$0xff] %v839
      %889 = vst [vmem:[%s855 + $0x28] sm:$0xff] %v840
      %890 = vst [vmem:[%s855 + $0x40] sm:$0xff] %v841
      %891 = vst [vmem:[%s855 + $0x58] sm:$0xff] %v842
      %892 = vst [vmem:[%s855 + $0x70] sm:$0xff] %v843
      %893 = vst [vmem:[%s855 + $0x88] sm:$0xff] %v844
      %894 = vst [vmem:[%s855 + $0xa0] sm:$0xff] %v845
      %895 = vst [vmem:[%s855 + $0xb8] sm:$0xff] %v846
      %896 = vst [vmem:[%s855 + $0xd0] sm:$0xff] %v847
      %897 = vst [vmem:[%s855 + $0xe8] sm:$0xff] %v848
      %898 = vst [vmem:[%s855 + $0x100] sm:$0xff] %v849
      %899 = vst [vmem:[%s855 + $0x118] sm:$0xff] %v850
      %900 = vst [vmem:[%s855 + $0x130] sm:$0xff] %v851
      %901 = vst [vmem:[%s855 + $0x148] sm:$0xff] %v852
      %902 = vst [vmem:[%s855 + $0x160] sm:$0xff] %v853
      %903 = vst [vmem:[%s855 + $0x178] sm:$0xff] %v854
      %v904 = vld [vmem:[#allocation2] sm:$0xff]
      %v905 = vld [vmem:[#allocation2 + $0x8] sm:$0xff]
      %v906 = vld [vmem:[#allocation2 + $0x10] sm:$0xff]
      %v907 = vld [vmem:[#allocation2 + $0x18] sm:$0xff]
      %v908 = vld [vmem:[#allocation2 + $0x20] sm:$0xff]
      %v909 = vld [vmem:[#allocation2 + $0x28] sm:$0xff]
      %v910 = vld [vmem:[#allocation2 + $0x30] sm:$0xff]
      %v911 = vld [vmem:[#allocation2 + $0x38] sm:$0xff]
      %v912 = vld [vmem:[#allocation2 + $0x40] sm:$0xff]
      %v913 = vld [vmem:[#allocation2 + $0x48] sm:$0xff]
      %v914 = vld [vmem:[#allocation2 + $0x50] sm:$0xff]
      %v915 = vld [vmem:[#allocation2 + $0x58] sm:$0xff]
      %v916 = vld [vmem:[#allocation2 + $0x60] sm:$0xff]
      %v917 = vld [vmem:[#allocation2 + $0x68] sm:$0xff]
      %v918 = vld [vmem:[#allocation2 + $0x70] sm:$0xff]
      %v919 = vld [vmem:[#allocation2 + $0x78] sm:$0xff]
      %v920 = vld [vmem:[#allocation2 + $0x80] sm:$0xff]
      %v921 = vld [vmem:[#allocation2 + $0x88] sm:$0xff]
      %v922 = vld [vmem:[#allocation2 + $0x90] sm:$0xff]
      %v923 = vld [vmem:[#allocation2 + $0x98] sm:$0xff]
      %v924 = vld [vmem:[#allocation2 + $0xa0] sm:$0xff]
      %v925 = vld [vmem:[#allocation2 + $0xa8] sm:$0xff]
      %v926 = vld [vmem:[#allocation2 + $0xb0] sm:$0xff]
      %v927 = vld [vmem:[#allocation2 + $0xb8] sm:$0xff]
      %v928 = vld [vmem:[#allocation2 + $0xc0] sm:$0xff]
      %v929 = vld [vmem:[#allocation2 + $0xc8] sm:$0xff]
      %v930 = vld [vmem:[#allocation2 + $0xd0] sm:$0xff]
      %v931 = vld [vmem:[#allocation2 + $0xd8] sm:$0xff]
      %v932 = vld [vmem:[#allocation2 + $0xe0] sm:$0xff]
      %v933 = vld [vmem:[#allocation2 + $0xe8] sm:$0xff]
      %v934 = vld [vmem:[#allocation2 + $0xf0] sm:$0xff]
      %v935 = vld [vmem:[#allocation2 + $0xf8] sm:$0xff]
      %v936 = vld [vmem:[#allocation2 + $0x100] sm:$0xff]
      %v937 = vld [vmem:[#allocation2 + $0x108] sm:$0xff]
      %v938 = vld [vmem:[#allocation2 + $0x110] sm:$0xff]
      %v939 = vld [vmem:[#allocation2 + $0x118] sm:$0xff]
      %v940 = vld [vmem:[#allocation2 + $0x120] sm:$0xff]
      %v941 = vld [vmem:[#allocation2 + $0x128] sm:$0xff]
      %v942 = vld [vmem:[#allocation2 + $0x130] sm:$0xff]
      %v943 = vld [vmem:[#allocation2 + $0x138] sm:$0xff]
      %v944 = vld [vmem:[#allocation2 + $0x140] sm:$0xff]
      %v945 = vld [vmem:[#allocation2 + $0x148] sm:$0xff]
      %v946 = vld [vmem:[#allocation2 + $0x150] sm:$0xff]
      %v947 = vld [vmem:[#allocation2 + $0x158] sm:$0xff]
      %v948 = vld [vmem:[#allocation2 + $0x160] sm:$0xff]
      %v949 = vld [vmem:[#allocation2 + $0x168] sm:$0xff]
      %v950 = vld [vmem:[#allocation2 + $0x170] sm:$0xff]
      %v951 = vld [vmem:[#allocation2 + $0x178] sm:$0xff]
      %v952 = vld [vmem:[%s3] sm:$0xf]
      %v953 = vld [vmem:[%s3 + $0x4] sm:$0xf]
      %v954 = vld [vmem:[%s3 + $0x8] sm:$0xf]
      %v955 = vld [vmem:[%s3 + $0xc] sm:$0xf]
      %v956 = vld [vmem:[%s3 + $0x10] sm:$0xf]
      %v957 = vld [vmem:[%s3 + $0x14] sm:$0xf]
      %v958 = vld [vmem:[%s3 + $0x18] sm:$0xf]
      %v959 = vld [vmem:[%s3 + $0x1c] sm:$0xf]
      %v960 = vld [vmem:[%s3 + $0x20] sm:$0xf]
      %v961 = vld [vmem:[%s3 + $0x24] sm:$0xf]
      %v962 = vld [vmem:[%s3 + $0x28] sm:$0xf]
      %v963 = vld [vmem:[%s3 + $0x2c] sm:$0xf]
      %v964 = vld [vmem:[%s3 + $0x30] sm:$0xf]
      %v965 = vld [vmem:[%s3 + $0x34] sm:$0xf]
      %v966 = vld [vmem:[%s3 + $0x38] sm:$0xf]
      %v967 = vld [vmem:[%s3 + $0x3c] sm:$0xf]
      %v968 = vld [vmem:[%s3 + $0x40] sm:$0xf]
      %v969 = vld [vmem:[%s3 + $0x44] sm:$0xf]
      %v970 = vld [vmem:[%s3 + $0x48] sm:$0xf]
      %v971 = vld [vmem:[%s3 + $0x4c] sm:$0xf]
      %v972 = vld [vmem:[%s3 + $0x50] sm:$0xf]
      %v973 = vld [vmem:[%s3 + $0x54] sm:$0xf]
      %v974 = vld [vmem:[%s3 + $0x58] sm:$0xf]
      %v975 = vld [vmem:[%s3 + $0x5c] sm:$0xf]
      %v976 = vld [vmem:[%s3 + $0x60] sm:$0xf]
      %v977 = vld [vmem:[%s3 + $0x64] sm:$0xf]
      %v978 = vld [vmem:[%s3 + $0x68] sm:$0xf]
      %v979 = vld [vmem:[%s3 + $0x6c] sm:$0xf]
      %v980 = vld [vmem:[%s3 + $0x70] sm:$0xf]
      %v981 = vld [vmem:[%s3 + $0x74] sm:$0xf]
      %v982 = vld [vmem:[%s3 + $0x78] sm:$0xf]
      %v983 = vld [vmem:[%s3 + $0x7c] sm:$0xf]
      %v984 = vld [vmem:[%s3 + $0x80] sm:$0xf]
      %v985 = vld [vmem:[%s3 + $0x84] sm:$0xf]
      %v986 = vld [vmem:[%s3 + $0x88] sm:$0xf]
      %v987 = vld [vmem:[%s3 + $0x8c] sm:$0xf]
      %v988 = vld [vmem:[%s3 + $0x90] sm:$0xf]
      %v989 = vld [vmem:[%s3 + $0x94] sm:$0xf]
      %v990 = vld [vmem:[%s3 + $0x98] sm:$0xf]
      %v991 = vld [vmem:[%s3 + $0x9c] sm:$0xf]
      %v992 = vld [vmem:[%s3 + $0xa0] sm:$0xf]
      %v993 = vld [vmem:[%s3 + $0xa4] sm:$0xf]
      %v994 = vld [vmem:[%s3 + $0xa8] sm:$0xf]
      %v995 = vld [vmem:[%s3 + $0xac] sm:$0xf]
      %v996 = vld [vmem:[%s3 + $0xb0] sm:$0xf]
      %v997 = vld [vmem:[%s3 + $0xb4] sm:$0xf]
      %v998 = vld [vmem:[%s3 + $0xb8] sm:$0xf]
      %v999 = vld [vmem:[%s3 + $0xbc] sm:$0xf]
      %v1000 = vld [vmem:[%s855] sm:$0xff]
      %v1001 = vld [vmem:[%s855 + $0x8] sm:$0xff]
      %v1002 = vld [vmem:[%s855 + $0x10] sm:$0xff]
      %v1003 = vld [vmem:[%s855 + $0x18] sm:$0xff]
      %v1004 = vld [vmem:[%s855 + $0x20] sm:$0xff]
      %v1005 = vld [vmem:[%s855 + $0x28] sm:$0xff]
      %v1006 = vld [vmem:[%s855 + $0x30] sm:$0xff]
      %v1007 = vld [vmem:[%s855 + $0x38] sm:$0xff]
      %v1008 = vld [vmem:[%s855 + $0x40] sm:$0xff]
      %v1009 = vld [vmem:[%s855 + $0x48] sm:$0xff]
      %v1010 = vld [vmem:[%s855 + $0x50] sm:$0xff]
      %v1011 = vld [vmem:[%s855 + $0x58] sm:$0xff]
      %v1012 = vld [vmem:[%s855 + $0x60] sm:$0xff]
      %v1013 = vld [vmem:[%s855 + $0x68] sm:$0xff]
      %v1014 = vld [vmem:[%s855 + $0x70] sm:$0xff]
      %v1015 = vld [vmem:[%s855 + $0x78] sm:$0xff]
      %v1016 = vld [vmem:[%s855 + $0x80] sm:$0xff]
      %v1017 = vld [vmem:[%s855 + $0x88] sm:$0xff]
      %v1018 = vld [vmem:[%s855 + $0x90] sm:$0xff]
      %v1019 = vld [vmem:[%s855 + $0x98] sm:$0xff]
      %v1020 = vld [vmem:[%s855 + $0xa0] sm:$0xff]
      %v1021 = vld [vmem:[%s855 + $0xa8] sm:$0xff]
      %v1022 = vld [vmem:[%s855 + $0xb0] sm:$0xff]
      %v1023 = vld [vmem:[%s855 + $0xb8] sm:$0xff]
      %v1024 = vld [vmem:[%s855 + $0xc0] sm:$0xff]
      %v1025 = vld [vmem:[%s855 + $0xc8] sm:$0xff]
      %v1026 = vld [vmem:[%s855 + $0xd0] sm:$0xff]
      %v1027 = vld [vmem:[%s855 + $0xd8] sm:$0xff]
      %v1028 = vld [vmem:[%s855 + $0xe0] sm:$0xff]
      %v1029 = vld [vmem:[%s855 + $0xe8] sm:$0xff]
      %v1030 = vld [vmem:[%s855 + $0xf0] sm:$0xff]
      %v1031 = vld [vmem:[%s855 + $0xf8] sm:$0xff]
      %v1032 = vld [vmem:[%s855 + $0x100] sm:$0xff]
      %v1033 = vld [vmem:[%s855 + $0x108] sm:$0xff]
      %v1034 = vld [vmem:[%s855 + $0x110] sm:$0xff]
      %v1035 = vld [vmem:[%s855 + $0x118] sm:$0xff]
      %v1036 = vld [vmem:[%s855 + $0x120] sm:$0xff]
      %v1037 = vld [vmem:[%s855 + $0x128] sm:$0xff]
      %v1038 = vld [vmem:[%s855 + $0x130] sm:$0xff]
      %v1039 = vld [vmem:[%s855 + $0x138] sm:$0xff]
      %v1040 = vld [vmem:[%s855 + $0x140] sm:$0xff]
      %v1041 = vld [vmem:[%s855 + $0x148] sm:$0xff]
      %v1042 = vld [vmem:[%s855 + $0x150] sm:$0xff]
      %v1043 = vld [vmem:[%s855 + $0x158] sm:$0xff]
      %v1044 = vld [vmem:[%s855 + $0x160] sm:$0xff]
      %v1045 = vld [vmem:[%s855 + $0x168] sm:$0xff]
      %v1046 = vld [vmem:[%s855 + $0x170] sm:$0xff]
      %v1047 = vld [vmem:[%s855 + $0x178] sm:$0xff]
      %s1048 = scalar_lea.vmem %s3, 192
      %v1049 = vld [vmem:[%s1048] sm:$0xf]
      %v1050 = vld [vmem:[%s1048 + $0x4] sm:$0xf]
      %v1051 = vld [vmem:[%s1048 + $0x8] sm:$0xf]
      %v1052 = vld [vmem:[%s1048 + $0xc] sm:$0xf]
      %v1053 = vld [vmem:[%s1048 + $0x10] sm:$0xf]
      %v1054 = vld [vmem:[%s1048 + $0x14] sm:$0xf]
      %v1055 = vld [vmem:[%s1048 + $0x18] sm:$0xf]
      %v1056 = vld [vmem:[%s1048 + $0x1c] sm:$0xf]
      %v1057 = vld [vmem:[%s1048 + $0x20] sm:$0xf]
      %v1058 = vld [vmem:[%s1048 + $0x24] sm:$0xf]
      %v1059 = vld [vmem:[%s1048 + $0x28] sm:$0xf]
      %v1060 = vld [vmem:[%s1048 + $0x2c] sm:$0xf]
      %v1061 = vld [vmem:[%s1048 + $0x30] sm:$0xf]
      %v1062 = vld [vmem:[%s1048 + $0x34] sm:$0xf]
      %v1063 = vld [vmem:[%s1048 + $0x38] sm:$0xf]
      %v1064 = vld [vmem:[%s1048 + $0x3c] sm:$0xf]
      %v1065 = vld [vmem:[%s1048 + $0x40] sm:$0xf]
      %v1066 = vld [vmem:[%s1048 + $0x44] sm:$0xf]
      %v1067 = vld [vmem:[%s1048 + $0x48] sm:$0xf]
      %v1068 = vld [vmem:[%s1048 + $0x4c] sm:$0xf]
      %v1069 = vld [vmem:[%s1048 + $0x50] sm:$0xf]
      %v1070 = vld [vmem:[%s1048 + $0x54] sm:$0xf]
      %v1071 = vld [vmem:[%s1048 + $0x58] sm:$0xf]
      %v1072 = vld [vmem:[%s1048 + $0x5c] sm:$0xf]
      %v1073 = vld [vmem:[%s1048 + $0x60] sm:$0xf]
      %v1074 = vld [vmem:[%s1048 + $0x64] sm:$0xf]
      %v1075 = vld [vmem:[%s1048 + $0x68] sm:$0xf]
      %v1076 = vld [vmem:[%s1048 + $0x6c] sm:$0xf]
      %v1077 = vld [vmem:[%s1048 + $0x70] sm:$0xf]
      %v1078 = vld [vmem:[%s1048 + $0x74] sm:$0xf]
      %v1079 = vld [vmem:[%s1048 + $0x78] sm:$0xf]
      %v1080 = vld [vmem:[%s1048 + $0x7c] sm:$0xf]
      %v1081 = vld [vmem:[%s1048 + $0x80] sm:$0xf]
      %v1082 = vld [vmem:[%s1048 + $0x84] sm:$0xf]
      %v1083 = vld [vmem:[%s1048 + $0x88] sm:$0xf]
      %v1084 = vld [vmem:[%s1048 + $0x8c] sm:$0xf]
      %v1085 = vld [vmem:[%s1048 + $0x90] sm:$0xf]
      %v1086 = vld [vmem:[%s1048 + $0x94] sm:$0xf]
      %v1087 = vld [vmem:[%s1048 + $0x98] sm:$0xf]
      %v1088 = vld [vmem:[%s1048 + $0x9c] sm:$0xf]
      %v1089 = vld [vmem:[%s1048 + $0xa0] sm:$0xf]
      %v1090 = vld [vmem:[%s1048 + $0xa4] sm:$0xf]
      %v1091 = vld [vmem:[%s1048 + $0xa8] sm:$0xf]
      %v1092 = vld [vmem:[%s1048 + $0xac] sm:$0xf]
      %v1093 = vld [vmem:[%s1048 + $0xb0] sm:$0xf]
      %v1094 = vld [vmem:[%s1048 + $0xb4] sm:$0xf]
      %v1095 = vld [vmem:[%s1048 + $0xb8] sm:$0xf]
      %v1096 = vld [vmem:[%s1048 + $0xbc] sm:$0xf]
      %v1145 = vunpack.c.l.b16 %v1049
      %v1146 = vunpack.c.l.b16 %v1050
      %v1147 = vunpack.c.l.b16 %v1051
      %v1148 = vunpack.c.l.b16 %v1052
      %v1149 = vunpack.c.l.b16 %v1053
      %v1150 = vunpack.c.l.b16 %v1054
      %v1151 = vunpack.c.l.b16 %v1055
      %v1152 = vunpack.c.l.b16 %v1056
      %v1153 = vunpack.c.l.b16 %v1057
      %v1154 = vunpack.c.l.b16 %v1058
      %v1155 = vunpack.c.l.b16 %v1059
      %v1156 = vunpack.c.l.b16 %v1060
      %v1157 = vunpack.c.l.b16 %v1061
      %v1158 = vunpack.c.l.b16 %v1062
      %v1159 = vunpack.c.l.b16 %v1063
      %v1160 = vunpack.c.l.b16 %v1064
      %v1161 = vunpack.c.l.b16 %v1065
      %v1162 = vunpack.c.l.b16 %v1066
      %v1163 = vunpack.c.l.b16 %v1067
      %v1164 = vunpack.c.l.b16 %v1068
      %v1165 = vunpack.c.l.b16 %v1069
      %v1166 = vunpack.c.l.b16 %v1070
      %v1167 = vunpack.c.l.b16 %v1071
      %v1168 = vunpack.c.l.b16 %v1072
      %v1169 = vunpack.c.l.b16 %v1073
      %v1170 = vunpack.c.l.b16 %v1074
      %v1171 = vunpack.c.l.b16 %v1075
      %v1172 = vunpack.c.l.b16 %v1076
      %v1173 = vunpack.c.l.b16 %v1077
      %v1174 = vunpack.c.l.b16 %v1078
      %v1175 = vunpack.c.l.b16 %v1079
      %v1176 = vunpack.c.l.b16 %v1080
      %v1177 = vunpack.c.l.b16 %v1081
      %v1178 = vunpack.c.l.b16 %v1082
      %v1179 = vunpack.c.l.b16 %v1083
      %v1180 = vunpack.c.l.b16 %v1084
      %v1181 = vunpack.c.l.b16 %v1085
      %v1182 = vunpack.c.l.b16 %v1086
      %v1183 = vunpack.c.l.b16 %v1087
      %v1184 = vunpack.c.l.b16 %v1088
      %v1185 = vunpack.c.l.b16 %v1089
      %v1186 = vunpack.c.l.b16 %v1090
      %v1187 = vunpack.c.l.b16 %v1091
      %v1188 = vunpack.c.l.b16 %v1092
      %v1189 = vunpack.c.l.b16 %v1093
      %v1190 = vunpack.c.l.b16 %v1094
      %v1191 = vunpack.c.l.b16 %v1095
      %v1192 = vunpack.c.l.b16 %v1096
      %v1193 = vpack.c.b16 %v1146, %v1145
      %v1194 = vpack.c.b16 %v1148, %v1147
      %v1195 = vpack.c.b16 %v1150, %v1149
      %v1196 = vpack.c.b16 %v1152, %v1151
      %v1197 = vpack.c.b16 %v1154, %v1153
      %v1198 = vpack.c.b16 %v1156, %v1155
      %v1199 = vpack.c.b16 %v1158, %v1157
      %v1200 = vpack.c.b16 %v1160, %v1159
      %v1201 = vpack.c.b16 %v1162, %v1161
      %v1202 = vpack.c.b16 %v1164, %v1163
      %v1203 = vpack.c.b16 %v1166, %v1165
      %v1204 = vpack.c.b16 %v1168, %v1167
      %v1205 = vpack.c.b16 %v1170, %v1169
      %v1206 = vpack.c.b16 %v1172, %v1171
      %v1207 = vpack.c.b16 %v1174, %v1173
      %v1208 = vpack.c.b16 %v1176, %v1175
      %v1209 = vpack.c.b16 %v1178, %v1177
      %v1210 = vpack.c.b16 %v1180, %v1179
      %v1211 = vpack.c.b16 %v1182, %v1181
      %v1212 = vpack.c.b16 %v1184, %v1183
      %v1213 = vpack.c.b16 %v1186, %v1185
      %v1214 = vpack.c.b16 %v1188, %v1187
      %v1215 = vpack.c.b16 %v1190, %v1189
      %v1216 = vpack.c.b16 %v1192, %v1191
      %1241 = vmatprep.subr.bf16.mxu0 0
      %1242 = vmatpush1.bf16.msra.mxu0 %v1193
      %1243 = vmatprep.subr.bf16.mxu0 0
      %1244 = vmatpush1.bf16.msra.mxu0 %v1194
      %1245 = vmatprep.subr.bf16.mxu0 0
      %1246 = vmatpush1.bf16.msra.mxu0 %v1195
      %1247 = vmatprep.subr.bf16.mxu0 0
      %1248 = vmatpush1.bf16.msra.mxu0 %v1196
      %1249 = vmatprep.subr.bf16.mxu0 0
      %1250 = vmatpush1.bf16.msra.mxu0 %v1197
      %1251 = vmatprep.subr.bf16.mxu0 0
      %1252 = vmatpush1.bf16.msra.mxu0 %v1198
      %1253 = vmatprep.subr.bf16.mxu0 0
      %1254 = vmatpush1.bf16.msra.mxu0 %v1199
      %1255 = vmatprep.subr.bf16.mxu0 0
      %1256 = vmatpush1.bf16.msra.mxu0 %v1200
      %1257 = vmatprep.subr.bf16.mxu0 0
      %1258 = vmatpush1.bf16.msra.mxu0 %v1201
      %1259 = vmatprep.subr.bf16.mxu0 0
      %1260 = vmatpush1.bf16.msra.mxu0 %v1202
      %1261 = vmatprep.subr.bf16.mxu0 0
      %1262 = vmatpush1.bf16.msra.mxu0 %v1203
      %1263 = vmatprep.subr.bf16.mxu0 0
      %1264 = vmatpush1.bf16.msra.mxu0 %v1204
      %1265 = vmatprep.subr.bf16.mxu0 0
      %1266 = vmatpush1.bf16.msra.mxu0 %v1205
      %1267 = vmatprep.subr.bf16.mxu0 0
      %1268 = vmatpush1.bf16.msra.mxu0 %v1206
      %1269 = vmatprep.subr.bf16.mxu0 0
      %1270 = vmatpush1.bf16.msra.mxu0 %v1207
      %1271 = vmatprep.subr.bf16.mxu0 0
      %1272 = vmatpush1.bf16.msra.mxu0 %v1208
      %1273 = vmatprep.mubr.bf16.mxu0 %v1001
      %1274 = vmatmul.mubr.bf16.gmra.mrb[0].mxu0 %v1000
      %v1275 = vpop.f32.mrb[0].mxu0
      %v1276 = vadd.f32 0.0, %v1275
      %v1277 = vpop.f32.mrb[0].mxu0
      %v1278 = vpop.f32.mrb[0].mxu0
      %v1279 = vadd.f32 0.0, %v1278
      %v1280 = vpop.f32.mrb[0].mxu0
      %1281 = vmatprep.mubr.bf16.mxu0 %v1004
      %1282 = vmatmul.mubr.bf16.gmra.mrb[0].mxu0 %v1003
      %v1283 = vpop.f32.mrb[0].mxu0
      %v1284 = vadd.f32 0.0, %v1283
      %v1285 = vpop.f32.mrb[0].mxu0
      %v1286 = vpop.f32.mrb[0].mxu0
      %v1287 = vadd.f32 0.0, %v1286
      %v1288 = vpop.f32.mrb[0].mxu0
      %1289 = vmatprep.mubr.bf16.mxu0 %v1007
      %1290 = vmatmul.mubr.bf16.gmra.mrb[0].mxu0 %v1006
      %v1291 = vpop.f32.mrb[0].mxu0
      %v1292 = vadd.f32 0.0, %v1291
      %v1293 = vpop.f32.mrb[0].mxu0
      %v1294 = vpop.f32.mrb[0].mxu0
      %v1295 = vadd.f32 0.0, %v1294
      %v1296 = vpop.f32.mrb[0].mxu0
      %1297 = vmatprep.mubr.bf16.mxu0 %v1010
      %1298 = vmatmul.mubr.bf16.gmra.mrb[0].mxu0 %v1009
      %v1299 = vpop.f32.mrb[0].mxu0
      %v1300 = vadd.f32 0.0, %v1299
      %v1301 = vpop.f32.mrb[0].mxu0
      %v1302 = vpop.f32.mrb[0].mxu0
      %v1303 = vadd.f32 0.0, %v1302
      %v1304 = vpop.f32.mrb[0].mxu0
      %1305 = vmatprep.mubr.bf16.mxu0 %v1013
      %1306 = vmatmul.mubr.bf16.gmra.mrb[0].mxu0 %v1012
      %v1307 = vpop.f32.mrb[0].mxu0
      %v1308 = vadd.f32 0.0, %v1307
      %v1309 = vpop.f32.mrb[0].mxu0
      %v1310 = vpop.f32.mrb[0].mxu0
      %v1311 = vadd.f32 0.0, %v1310
      %v1312 = vpop.f32.mrb[0].mxu0
      %1313 = vmatprep.mubr.bf16.mxu0 %v1016
      %1314 = vmatmul.mubr.bf16.gmra.mrb[0].mxu0 %v1015
      %v1315 = vpop.f32.mrb[0].mxu0
      %v1316 = vadd.f32 0.0, %v1315
      %v1317 = vpop.f32.mrb[0].mxu0
      %v1318 = vpop.f32.mrb[0].mxu0
      %v1319 = vadd.f32 0.0, %v1318
      %v1320 = vpop.f32.mrb[0].mxu0
      %1321 = vmatprep.mubr.bf16.mxu0 %v1019
      %1322 = vmatmul.mubr.bf16.gmra.mrb[0].mxu0 %v1018
      %v1323 = vpop.f32.mrb[0].mxu0
      %v1324 = vadd.f32 0.0, %v1323
      %v1325 = vpop.f32.mrb[0].mxu0
      %v1326 = vpop.f32.mrb[0].mxu0
      %v1327 = vadd.f32 0.0, %v1326
      %v1328 = vpop.f32.mrb[0].mxu0
      %1329 = vmatprep.mubr.bf16.mxu0 %v1022
      %1330 = vmatmul.mubr.bf16.gmra.mrb[0].mxu0 %v1021
      %v1331 = vpop.f32.mrb[0].mxu0
      %v1332 = vadd.f32 0.0, %v1331
      %v1333 = vpop.f32.mrb[0].mxu0
      %v1334 = vpop.f32.mrb[0].mxu0
      %v1335 = vadd.f32 0.0, %v1334
      %v1336 = vpop.f32.mrb[0].mxu0
      %1337 = vmatprep.mubr.bf16.mxu0 %v1025
      %1338 = vmatmul.mubr.bf16.gmra.mrb[0].mxu0 %v1024
      %v1339 = vpop.f32.mrb[0].mxu0
      %v1340 = vadd.f32 0.0, %v1339
      %v1341 = vpop.f32.mrb[0].mxu0
      %v1342 = vpop.f32.mrb[0].mxu0
      %v1343 = vadd.f32 0.0, %v1342
      %v1344 = vpop.f32.mrb[0].mxu0
      %1345 = vmatprep.mubr.bf16.mxu0 %v1028
      %1346 = vmatmul.mubr.bf16.gmra.mrb[0].mxu0 %v1027
      %v1347 = vpop.f32.mrb[0].mxu0
      %v1348 = vadd.f32 0.0, %v1347
      %v1349 = vpop.f32.mrb[0].mxu0
      %v1350 = vpop.f32.mrb[0].mxu0
      %v1351 = vadd.f32 0.0, %v1350
      %v1352 = vpop.f32.mrb[0].mxu0
      %1353 = vmatprep.mubr.bf16.mxu0 %v1031
      %1354 = vmatmul.mubr.bf16.gmra.mrb[0].mxu0 %v1030
      %v1355 = vpop.f32.mrb[0].mxu0
      %v1356 = vadd.f32 0.0, %v1355
      %v1357 = vpop.f32.mrb[0].mxu0
      %v1358 = vpop.f32.mrb[0].mxu0
      %v1359 = vadd.f32 0.0, %v1358
      %v1360 = vpop.f32.mrb[0].mxu0
      %1361 = vmatprep.mubr.bf16.mxu0 %v1034
      %1362 = vmatmul.mubr.bf16.gmra.mrb[0].mxu0 %v1033
      %v1363 = vpop.f32.mrb[0].mxu0
      %v1364 = vadd.f32 0.0, %v1363
      %v1365 = vpop.f32.mrb[0].mxu0
      %v1366 = vpop.f32.mrb[0].mxu0
      %v1367 = vadd.f32 0.0, %v1366
      %v1368 = vpop.f32.mrb[0].mxu0
      %1369 = vmatprep.mubr.bf16.mxu0 %v1037
      %1370 = vmatmul.mubr.bf16.gmra.mrb[0].mxu0 %v1036
      %v1371 = vpop.f32.mrb[0].mxu0
      %v1372 = vadd.f32 0.0, %v1371
      %v1373 = vpop.f32.mrb[0].mxu0
      %v1374 = vpop.f32.mrb[0].mxu0
      %v1375 = vadd.f32 0.0, %v1374
      %v1376 = vpop.f32.mrb[0].mxu0
      %1377 = vmatprep.mubr.bf16.mxu0 %v1040
      %1378 = vmatmul.mubr.bf16.gmra.mrb[0].mxu0 %v1039
      %v1379 = vpop.f32.mrb[0].mxu0
      %v1380 = vadd.f32 0.0, %v1379
      %v1381 = vpop.f32.mrb[0].mxu0
      %v1382 = vpop.f32.mrb[0].mxu0
      %v1383 = vadd.f32 0.0, %v1382
      %v1384 = vpop.f32.mrb[0].mxu0
      %1385 = vmatprep.mubr.bf16.mxu0 %v1043
      %1386 = vmatmul.mubr.bf16.gmra.mrb[0].mxu0 %v1042
      %v1387 = vpop.f32.mrb[0].mxu0
      %v1388 = vadd.f32 0.0, %v1387
      %v1389 = vpop.f32.mrb[0].mxu0
      %v1390 = vpop.f32.mrb[0].mxu0
      %v1391 = vadd.f32 0.0, %v1390
      %v1392 = vpop.f32.mrb[0].mxu0
      %1393 = vmatprep.mubr.bf16.mxu0 %v1046
      %1394 = vmatmul.mubr.bf16.gmra.mrb[0].mxu0 %v1045
      %v1395 = vpop.f32.mrb[0].mxu0
      %v1396 = vadd.f32 0.0, %v1395
      %v1397 = vpop.f32.mrb[0].mxu0
      %v1398 = vpop.f32.mrb[0].mxu0
      %v1399 = vadd.f32 0.0, %v1398
      %v1400 = vpop.f32.mrb[0].mxu0
      %1401 = vdwg.mxu0
      %1402 = vmatprep.subr.bf16.mxu0 0
      %1403 = vmatpush1.bf16.msra.mxu0 %v1209
      %1404 = vmatprep.subr.bf16.mxu0 0
      %1405 = vmatpush1.bf16.msra.mxu0 %v1210
      %1406 = vmatprep.subr.bf16.mxu0 0
      %1407 = vmatpush1.bf16.msra.mxu0 %v1211
      %1408 = vmatprep.subr.bf16.mxu0 0
      %1409 = vmatpush1.bf16.msra.mxu0 %v1212
      %1410 = vmatprep.subr.bf16.mxu0 0
      %1411 = vmatpush1.bf16.msra.mxu0 %v1213
      %1412 = vmatprep.subr.bf16.mxu0 0
      %1413 = vmatpush1.bf16.msra.mxu0 %v1214
      %1414 = vmatprep.subr.bf16.mxu0 0
      %1415 = vmatpush1.bf16.msra.mxu0 %v1215
      %1416 = vmatprep.subr.bf16.mxu0 0
      %1417 = vmatpush1.bf16.msra.mxu0 %v1216
      %1418 = vmatprep.subr.bf16.mxu0 0
      %1419 = vmatpush1.bf16.msra.mxu0 0
      %1420 = vmatprep.subr.bf16.mxu0 0
      %1421 = vmatpush1.bf16.msra.mxu0 0
      %1422 = vmatprep.subr.bf16.mxu0 0
      %1423 = vmatpush1.bf16.msra.mxu0 0
      %1424 = vmatprep.subr.bf16.mxu0 0
      %1425 = vmatpush1.bf16.msra.mxu0 0
      %1426 = vmatprep.subr.bf16.mxu0 0
      %1427 = vmatpush1.bf16.msra.mxu0 0
      %1428 = vmatprep.subr.bf16.mxu0 0
      %1429 = vmatpush1.bf16.msra.mxu0 0
      %1430 = vmatprep.subr.bf16.mxu0 0
      %1431 = vmatpush1.bf16.msra.mxu0 0
      %1432 = vmatprep.subr.bf16.mxu0 0
      %1433 = vmatpush1.bf16.msra.mxu0 0
      %1434 = vmatprep.mubr.bf16.mxu0 0
      %1435 = vmatmul.mubr.bf16.gmra.mrb[0].mxu0 %v1002
      %v1436 = vpop.f32.mrb[0].mxu0
      %v1437 = vadd.f32 %v1276, %v1436
      %v1438 = vpop.f32.mrb[0].mxu0
      %v1439 = vpop.f32.mrb[0].mxu0
      %v1440 = vadd.f32 %v1279, %v1439
      %v1441 = vpop.f32.mrb[0].mxu0
      %1442 = vmatprep.mubr.bf16.mxu0 0
      %1443 = vmatmul.mubr.bf16.gmra.mrb[0].mxu0 %v1005
      %v1444 = vpop.f32.mrb[0].mxu0
      %v1445 = vadd.f32 %v1284, %v1444
      %v1446 = vpop.f32.mrb[0].mxu0
      %v1447 = vpop.f32.mrb[0].mxu0
      %v1448 = vadd.f32 %v1287, %v1447
      %v1449 = vpop.f32.mrb[0].mxu0
      %1450 = vmatprep.mubr.bf16.mxu0 0
      %1451 = vmatmul.mubr.bf16.gmra.mrb[0].mxu0 %v1008
      %v1452 = vpop.f32.mrb[0].mxu0
      %v1453 = vadd.f32 %v1292, %v1452
      %v1454 = vpop.f32.mrb[0].mxu0
      %v1455 = vpop.f32.mrb[0].mxu0
      %v1456 = vadd.f32 %v1295, %v1455
      %v1457 = vpop.f32.mrb[0].mxu0
      %1458 = vmatprep.mubr.bf16.mxu0 0
      %1459 = vmatmul.mubr.bf16.gmra.mrb[0].mxu0 %v1011
      %v1460 = vpop.f32.mrb[0].mxu0
      %v1461 = vadd.f32 %v1300, %v1460
      %v1462 = vpop.f32.mrb[0].mxu0
      %v1463 = vpop.f32.mrb[0].mxu0
      %v1464 = vadd.f32 %v1303, %v1463
      %v1465 = vpop.f32.mrb[0].mxu0
      %1466 = vmatprep.mubr.bf16.mxu0 0
      %1467 = vmatmul.mubr.bf16.gmra.mrb[0].mxu0 %v1014
      %v1468 = vpop.f32.mrb[0].mxu0
      %v1469 = vadd.f32 %v1308, %v1468
      %v1470 = vpop.f32.mrb[0].mxu0
      %v1471 = vpop.f32.mrb[0].mxu0
      %v1472 = vadd.f32 %v1311, %v1471
      %v1473 = vpop.f32.mrb[0].mxu0
      %1474 = vmatprep.mubr.bf16.mxu0 0
      %1475 = vmatmul.mubr.bf16.gmra.mrb[0].mxu0 %v1017
      %v1476 = vpop.f32.mrb[0].mxu0
      %v1477 = vadd.f32 %v1316, %v1476
      %v1478 = vpop.f32.mrb[0].mxu0
      %v1479 = vpop.f32.mrb[0].mxu0
      %v1480 = vadd.f32 %v1319, %v1479
      %v1481 = vpop.f32.mrb[0].mxu0
      %1482 = vmatprep.mubr.bf16.mxu0 0
      %1483 = vmatmul.mubr.bf16.gmra.mrb[0].mxu0 %v1020
      %v1484 = vpop.f32.mrb[0].mxu0
      %v1485 = vadd.f32 %v1324, %v1484
      %v1486 = vpop.f32.mrb[0].mxu0
      %v1487 = vpop.f32.mrb[0].mxu0
      %v1488 = vadd.f32 %v1327, %v1487
      %v1489 = vpop.f32.mrb[0].mxu0
      %1490 = vmatprep.mubr.bf16.mxu0 0
      %1491 = vmatmul.mubr.bf16.gmra.mrb[0].mxu0 %v1023
      %v1492 = vpop.f32.mrb[0].mxu0
      %v1493 = vadd.f32 %v1332, %v1492
      %v1494 = vpop.f32.mrb[0].mxu0
      %v1495 = vpop.f32.mrb[0].mxu0
      %v1496 = vadd.f32 %v1335, %v1495
      %v1497 = vpop.f32.mrb[0].mxu0
      %1498 = vmatprep.mubr.bf16.mxu0 0
      %1499 = vmatmul.mubr.bf16.gmra.mrb[0].mxu0 %v1026
      %v1500 = vpop.f32.mrb[0].mxu0
      %v1501 = vadd.f32 %v1340, %v1500
      %v1502 = vpop.f32.mrb[0].mxu0
      %v1503 = vpop.f32.mrb[0].mxu0
      %v1504 = vadd.f32 %v1343, %v1503
      %v1505 = vpop.f32.mrb[0].mxu0
      %1506 = vmatprep.mubr.bf16.mxu0 0
      %1507 = vmatmul.mubr.bf16.gmra.mrb[0].mxu0 %v1029
      %v1508 = vpop.f32.mrb[0].mxu0
      %v1509 = vadd.f32 %v1348, %v1508
      %v1510 = vpop.f32.mrb[0].mxu0
      %v1511 = vpop.f32.mrb[0].mxu0
      %v1512 = vadd.f32 %v1351, %v1511
      %v1513 = vpop.f32.mrb[0].mxu0
      %1514 = vmatprep.mubr.bf16.mxu0 0
      %1515 = vmatmul.mubr.bf16.gmra.mrb[0].mxu0 %v1032
      %v1516 = vpop.f32.mrb[0].mxu0
      %v1517 = vadd.f32 %v1356, %v1516
      %v1518 = vpop.f32.mrb[0].mxu0
      %v1519 = vpop.f32.mrb[0].mxu0
      %v1520 = vadd.f32 %v1359, %v1519
      %v1521 = vpop.f32.mrb[0].mxu0
      %1522 = vmatprep.mubr.bf16.mxu0 0
      %1523 = vmatmul.mubr.bf16.gmra.mrb[0].mxu0 %v1035
      %v1524 = vpop.f32.mrb[0].mxu0
      %v1525 = vadd.f32 %v1364, %v1524
      %v1526 = vpop.f32.mrb[0].mxu0
      %v1527 = vpop.f32.mrb[0].mxu0
      %v1528 = vadd.f32 %v1367, %v1527
      %v1529 = vpop.f32.mrb[0].mxu0
      %1530 = vmatprep.mubr.bf16.mxu0 0
      %1531 = vmatmul.mubr.bf16.gmra.mrb[0].mxu0 %v1038
      %v1532 = vpop.f32.mrb[0].mxu0
      %v1533 = vadd.f32 %v1372, %v1532
      %v1534 = vpop.f32.mrb[0].mxu0
      %v1535 = vpop.f32.mrb[0].mxu0
      %v1536 = vadd.f32 %v1375, %v1535
      %v1537 = vpop.f32.mrb[0].mxu0
      %1538 = vmatprep.mubr.bf16.mxu0 0
      %1539 = vmatmul.mubr.bf16.gmra.mrb[0].mxu0 %v1041
      %v1540 = vpop.f32.mrb[0].mxu0
      %v1541 = vadd.f32 %v1380, %v1540
      %v1542 = vpop.f32.mrb[0].mxu0
      %v1543 = vpop.f32.mrb[0].mxu0
      %v1544 = vadd.f32 %v1383, %v1543
      %v1545 = vpop.f32.mrb[0].mxu0
      %1546 = vmatprep.mubr.bf16.mxu0 0
      %1547 = vmatmul.mubr.bf16.gmra.mrb[0].mxu0 %v1044
      %v1548 = vpop.f32.mrb[0].mxu0
      %v1549 = vadd.f32 %v1388, %v1548
      %v1550 = vpop.f32.mrb[0].mxu0
      %v1551 = vpop.f32.mrb[0].mxu0
      %v1552 = vadd.f32 %v1391, %v1551
      %v1553 = vpop.f32.mrb[0].mxu0
      %1554 = vmatprep.mubr.bf16.mxu0 0
      %1555 = vmatmul.mubr.bf16.gmra.mrb[0].mxu0 %v1047
      %v1556 = vpop.f32.mrb[0].mxu0
      %v1557 = vadd.f32 %v1396, %v1556
      %v1558 = vpop.f32.mrb[0].mxu0
      %v1559 = vpop.f32.mrb[0].mxu0
      %v1560 = vadd.f32 %v1399, %v1559
      %v1561 = vpop.f32.mrb[0].mxu0
      %1562 = vdwg.mxu0
      %v1611 = vunpack.c.l.b16 %v952
      %v1612 = vunpack.c.l.b16 %v953
      %v1613 = vunpack.c.l.b16 %v954
      %v1614 = vunpack.c.l.b16 %v955
      %v1615 = vunpack.c.l.b16 %v956
      %v1616 = vunpack.c.l.b16 %v957
      %v1617 = vunpack.c.l.b16 %v958
      %v1618 = vunpack.c.l.b16 %v959
      %v1619 = vunpack.c.l.b16 %v960
      %v1620 = vunpack.c.l.b16 %v961
      %v1621 = vunpack.c.l.b16 %v962
      %v1622 = vunpack.c.l.b16 %v963
      %v1623 = vunpack.c.l.b16 %v964
      %v1624 = vunpack.c.l.b16 %v965
      %v1625 = vunpack.c.l.b16 %v966
      %v1626 = vunpack.c.l.b16 %v967
      %v1627 = vunpack.c.l.b16 %v968
      %v1628 = vunpack.c.l.b16 %v969
      %v1629 = vunpack.c.l.b16 %v970
      %v1630 = vunpack.c.l.b16 %v971
      %v1631 = vunpack.c.l.b16 %v972
      %v1632 = vunpack.c.l.b16 %v973
      %v1633 = vunpack.c.l.b16 %v974
      %v1634 = vunpack.c.l.b16 %v975
      %v1635 = vunpack.c.l.b16 %v976
      %v1636 = vunpack.c.l.b16 %v977
      %v1637 = vunpack.c.l.b16 %v978
      %v1638 = vunpack.c.l.b16 %v979
      %v1639 = vunpack.c.l.b16 %v980
      %v1640 = vunpack.c.l.b16 %v981
      %v1641 = vunpack.c.l.b16 %v982
      %v1642 = vunpack.c.l.b16 %v983
      %v1643 = vunpack.c.l.b16 %v984
      %v1644 = vunpack.c.l.b16 %v985
      %v1645 = vunpack.c.l.b16 %v986
      %v1646 = vunpack.c.l.b16 %v987
      %v1647 = vunpack.c.l.b16 %v988
      %v1648 = vunpack.c.l.b16 %v989
      %v1649 = vunpack.c.l.b16 %v990
      %v1650 = vunpack.c.l.b16 %v991
      %v1651 = vunpack.c.l.b16 %v992
      %v1652 = vunpack.c.l.b16 %v993
      %v1653 = vunpack.c.l.b16 %v994
      %v1654 = vunpack.c.l.b16 %v995
      %v1655 = vunpack.c.l.b16 %v996
      %v1656 = vunpack.c.l.b16 %v997
      %v1657 = vunpack.c.l.b16 %v998
      %v1658 = vunpack.c.l.b16 %v999
      %v1659 = vpack.c.b16 %v1612, %v1611
      %v1660 = vpack.c.b16 %v1614, %v1613
      %v1661 = vpack.c.b16 %v1616, %v1615
      %v1662 = vpack.c.b16 %v1618, %v1617
      %v1663 = vpack.c.b16 %v1620, %v1619
      %v1664 = vpack.c.b16 %v1622, %v1621
      %v1665 = vpack.c.b16 %v1624, %v1623
      %v1666 = vpack.c.b16 %v1626, %v1625
      %v1667 = vpack.c.b16 %v1628, %v1627
      %v1668 = vpack.c.b16 %v1630, %v1629
      %v1669 = vpack.c.b16 %v1632, %v1631
      %v1670 = vpack.c.b16 %v1634, %v1633
      %v1671 = vpack.c.b16 %v1636, %v1635
      %v1672 = vpack.c.b16 %v1638, %v1637
      %v1673 = vpack.c.b16 %v1640, %v1639
      %v1674 = vpack.c.b16 %v1642, %v1641
      %v1675 = vpack.c.b16 %v1644, %v1643
      %v1676 = vpack.c.b16 %v1646, %v1645
      %v1677 = vpack.c.b16 %v1648, %v1647
      %v1678 = vpack.c.b16 %v1650, %v1649
      %v1679 = vpack.c.b16 %v1652, %v1651
      %v1680 = vpack.c.b16 %v1654, %v1653
      %v1681 = vpack.c.b16 %v1656, %v1655
      %v1682 = vpack.c.b16 %v1658, %v1657
      %1707 = vmatprep.subr.bf16.mxu0 0
      %1708 = vmatpush1.bf16.msra.mxu0 %v1659
      %1709 = vmatprep.subr.bf16.mxu0 0
      %1710 = vmatpush1.bf16.msra.mxu0 %v1660
      %1711 = vmatprep.subr.bf16.mxu0 0
      %1712 = vmatpush1.bf16.msra.mxu0 %v1661
      %1713 = vmatprep.subr.bf16.mxu0 0
      %1714 = vmatpush1.bf16.msra.mxu0 %v1662
      %1715 = vmatprep.subr.bf16.mxu0 0
      %1716 = vmatpush1.bf16.msra.mxu0 %v1663
      %1717 = vmatprep.subr.bf16.mxu0 0
      %1718 = vmatpush1.bf16.msra.mxu0 %v1664
      %1719 = vmatprep.subr.bf16.mxu0 0
      %1720 = vmatpush1.bf16.msra.mxu0 %v1665
      %1721 = vmatprep.subr.bf16.mxu0 0
      %1722 = vmatpush1.bf16.msra.mxu0 %v1666
      %1723 = vmatprep.subr.bf16.mxu0 0
      %1724 = vmatpush1.bf16.msra.mxu0 %v1667
      %1725 = vmatprep.subr.bf16.mxu0 0
      %1726 = vmatpush1.bf16.msra.mxu0 %v1668
      %1727 = vmatprep.subr.bf16.mxu0 0
      %1728 = vmatpush1.bf16.msra.mxu0 %v1669
      %1729 = vmatprep.subr.bf16.mxu0 0
      %1730 = vmatpush1.bf16.msra.mxu0 %v1670
      %1731 = vmatprep.subr.bf16.mxu0 0
      %1732 = vmatpush1.bf16.msra.mxu0 %v1671
      %1733 = vmatprep.subr.bf16.mxu0 0
      %1734 = vmatpush1.bf16.msra.mxu0 %v1672
      %1735 = vmatprep.subr.bf16.mxu0 0
      %1736 = vmatpush1.bf16.msra.mxu0 %v1673
      %1737 = vmatprep.subr.bf16.mxu0 0
      %1738 = vmatpush1.bf16.msra.mxu0 %v1674
      %1739 = vmatprep.mubr.bf16.mxu0 %v905
      %1740 = vmatmul.mubr.bf16.gmra.mrb[0].mxu0 %v904
      %v1741 = vpop.f32.mrb[0].mxu0
      %v1742 = vadd.f32 %v1437, %v1741
      %v1743 = vpop.f32.mrb[0].mxu0
      %v1744 = vpop.f32.mrb[0].mxu0
      %v1745 = vadd.f32 %v1440, %v1744
      %v1746 = vpop.f32.mrb[0].mxu0
      %1747 = vmatprep.mubr.bf16.mxu0 %v908
      %1748 = vmatmul.mubr.bf16.gmra.mrb[0].mxu0 %v907
      %v1749 = vpop.f32.mrb[0].mxu0
      %v1750 = vadd.f32 %v1445, %v1749
      %v1751 = vpop.f32.mrb[0].mxu0
      %v1752 = vpop.f32.mrb[0].mxu0
      %v1753 = vadd.f32 %v1448, %v1752
      %v1754 = vpop.f32.mrb[0].mxu0
      %1755 = vmatprep.mubr.bf16.mxu0 %v911
      %1756 = vmatmul.mubr.bf16.gmra.mrb[0].mxu0 %v910
      %v1757 = vpop.f32.mrb[0].mxu0
      %v1758 = vadd.f32 %v1453, %v1757
      %v1759 = vpop.f32.mrb[0].mxu0
      %v1760 = vpop.f32.mrb[0].mxu0
      %v1761 = vadd.f32 %v1456, %v1760
      %v1762 = vpop.f32.mrb[0].mxu0
      %1763 = vmatprep.mubr.bf16.mxu0 %v914
      %1764 = vmatmul.mubr.bf16.gmra.mrb[0].mxu0 %v913
      %v1765 = vpop.f32.mrb[0].mxu0
      %v1766 = vadd.f32 %v1461, %v1765
      %v1767 = vpop.f32.mrb[0].mxu0
      %v1768 = vpop.f32.mrb[0].mxu0
      %v1769 = vadd.f32 %v1464, %v1768
      %v1770 = vpop.f32.mrb[0].mxu0
      %1771 = vmatprep.mubr.bf16.mxu0 %v917
      %1772 = vmatmul.mubr.bf16.gmra.mrb[0].mxu0 %v916
      %v1773 = vpop.f32.mrb[0].mxu0
      %v1774 = vadd.f32 %v1469, %v1773
      %v1775 = vpop.f32.mrb[0].mxu0
      %v1776 = vpop.f32.mrb[0].mxu0
      %v1777 = vadd.f32 %v1472, %v1776
      %v1778 = vpop.f32.mrb[0].mxu0
      %1779 = vmatprep.mubr.bf16.mxu0 %v920
      %1780 = vmatmul.mubr.bf16.gmra.mrb[0].mxu0 %v919
      %v1781 = vpop.f32.mrb[0].mxu0
      %v1782 = vadd.f32 %v1477, %v1781
      %v1783 = vpop.f32.mrb[0].mxu0
      %v1784 = vpop.f32.mrb[0].mxu0
      %v1785 = vadd.f32 %v1480, %v1784
      %v1786 = vpop.f32.mrb[0].mxu0
      %1787 = vmatprep.mubr.bf16.mxu0 %v923
      %1788 = vmatmul.mubr.bf16.gmra.mrb[0].mxu0 %v922
      %v1789 = vpop.f32.mrb[0].mxu0
      %v1790 = vadd.f32 %v1485, %v1789
      %v1791 = vpop.f32.mrb[0].mxu0
      %v1792 = vpop.f32.mrb[0].mxu0
      %v1793 = vadd.f32 %v1488, %v1792
      %v1794 = vpop.f32.mrb[0].mxu0
      %1795 = vmatprep.mubr.bf16.mxu0 %v926
      %1796 = vmatmul.mubr.bf16.gmra.mrb[0].mxu0 %v925
      %v1797 = vpop.f32.mrb[0].mxu0
      %v1798 = vadd.f32 %v1493, %v1797
      %v1799 = vpop.f32.mrb[0].mxu0
      %v1800 = vpop.f32.mrb[0].mxu0
      %v1801 = vadd.f32 %v1496, %v1800
      %v1802 = vpop.f32.mrb[0].mxu0
      %1803 = vmatprep.mubr.bf16.mxu0 %v929
      %1804 = vmatmul.mubr.bf16.gmra.mrb[0].mxu0 %v928
      %v1805 = vpop.f32.mrb[0].mxu0
      %v1806 = vadd.f32 %v1501, %v1805
      %v1807 = vpop.f32.mrb[0].mxu0
      %v1808 = vpop.f32.mrb[0].mxu0
      %v1809 = vadd.f32 %v1504, %v1808
      %v1810 = vpop.f32.mrb[0].mxu0
      %1811 = vmatprep.mubr.bf16.mxu0 %v932
      %1812 = vmatmul.mubr.bf16.gmra.mrb[0].mxu0 %v931
      %v1813 = vpop.f32.mrb[0].mxu0
      %v1814 = vadd.f32 %v1509, %v1813
      %v1815 = vpop.f32.mrb[0].mxu0
      %v1816 = vpop.f32.mrb[0].mxu0
      %v1817 = vadd.f32 %v1512, %v1816
      %v1818 = vpop.f32.mrb[0].mxu0
      %1819 = vmatprep.mubr.bf16.mxu0 %v935
      %1820 = vmatmul.mubr.bf16.gmra.mrb[0].mxu0 %v934
      %v1821 = vpop.f32.mrb[0].mxu0
      %v1822 = vadd.f32 %v1517, %v1821
      %v1823 = vpop.f32.mrb[0].mxu0
      %v1824 = vpop.f32.mrb[0].mxu0
      %v1825 = vadd.f32 %v1520, %v1824
      %v1826 = vpop.f32.mrb[0].mxu0
      %1827 = vmatprep.mubr.bf16.mxu0 %v938
      %1828 = vmatmul.mubr.bf16.gmra.mrb[0].mxu0 %v937
      %v1829 = vpop.f32.mrb[0].mxu0
      %v1830 = vadd.f32 %v1525, %v1829
      %v1831 = vpop.f32.mrb[0].mxu0
      %v1832 = vpop.f32.mrb[0].mxu0
      %v1833 = vadd.f32 %v1528, %v1832
      %v1834 = vpop.f32.mrb[0].mxu0
      %1835 = vmatprep.mubr.bf16.mxu0 %v941
      %1836 = vmatmul.mubr.bf16.gmra.mrb[0].mxu0 %v940
      %v1837 = vpop.f32.mrb[0].mxu0
      %v1838 = vadd.f32 %v1533, %v1837
      %v1839 = vpop.f32.mrb[0].mxu0
      %v1840 = vpop.f32.mrb[0].mxu0
      %v1841 = vadd.f32 %v1536, %v1840
      %v1842 = vpop.f32.mrb[0].mxu0
      %1843 = vmatprep.mubr.bf16.mxu0 %v944
      %1844 = vmatmul.mubr.bf16.gmra.mrb[0].mxu0 %v943
      %v1845 = vpop.f32.mrb[0].mxu0
      %v1846 = vadd.f32 %v1541, %v1845
      %v1847 = vpop.f32.mrb[0].mxu0
      %v1848 = vpop.f32.mrb[0].mxu0
      %v1849 = vadd.f32 %v1544, %v1848
      %v1850 = vpop.f32.mrb[0].mxu0
      %1851 = vmatprep.mubr.bf16.mxu0 %v947
      %1852 = vmatmul.mubr.bf16.gmra.mrb[0].mxu0 %v946
      %v1853 = vpop.f32.mrb[0].mxu0
      %v1854 = vadd.f32 %v1549, %v1853
      %v1855 = vpop.f32.mrb[0].mxu0
      %v1856 = vpop.f32.mrb[0].mxu0
      %v1857 = vadd.f32 %v1552, %v1856
      %v1858 = vpop.f32.mrb[0].mxu0
      %1859 = vmatprep.mubr.bf16.mxu0 %v950
      %1860 = vmatmul.mubr.bf16.gmra.mrb[0].mxu0 %v949
      %v1861 = vpop.f32.mrb[0].mxu0
      %v1862 = vadd.f32 %v1557, %v1861
      %v1863 = vpop.f32.mrb[0].mxu0
      %v1864 = vpop.f32.mrb[0].mxu0
      %v1865 = vadd.f32 %v1560, %v1864
      %v1866 = vpop.f32.mrb[0].mxu0
      %1867 = vdwg.mxu0
      %1868 = vmatprep.subr.bf16.mxu0 0
      %1869 = vmatpush1.bf16.msra.mxu0 %v1675
      %1870 = vmatprep.subr.bf16.mxu0 0
      %1871 = vmatpush1.bf16.msra.mxu0 %v1676
      %1872 = vmatprep.subr.bf16.mxu0 0
      %1873 = vmatpush1.bf16.msra.mxu0 %v1677
      %1874 = vmatprep.subr.bf16.mxu0 0
      %1875 = vmatpush1.bf16.msra.mxu0 %v1678
      %1876 = vmatprep.subr.bf16.mxu0 0
      %1877 = vmatpush1.bf16.msra.mxu0 %v1679
      %1878 = vmatprep.subr.bf16.mxu0 0
      %1879 = vmatpush1.bf16.msra.mxu0 %v1680
      %1880 = vmatprep.subr.bf16.mxu0 0
      %1881 = vmatpush1.bf16.msra.mxu0 %v1681
      %1882 = vmatprep.subr.bf16.mxu0 0
      %1883 = vmatpush1.bf16.msra.mxu0 %v1682
      %1884 = vmatprep.subr.bf16.mxu0 0
      %1885 = vmatpush1.bf16.msra.mxu0 0
      %1886 = vmatprep.subr.bf16.mxu0 0
      %1887 = vmatpush1.bf16.msra.mxu0 0
      %1888 = vmatprep.subr.bf16.mxu0 0
      %1889 = vmatpush1.bf16.msra.mxu0 0
      %1890 = vmatprep.subr.bf16.mxu0 0
      %1891 = vmatpush1.bf16.msra.mxu0 0
      %1892 = vmatprep.subr.bf16.mxu0 0
      %1893 = vmatpush1.bf16.msra.mxu0 0
      %1894 = vmatprep.subr.bf16.mxu0 0
      %1895 = vmatpush1.bf16.msra.mxu0 0
      %1896 = vmatprep.subr.bf16.mxu0 0
      %1897 = vmatpush1.bf16.msra.mxu0 0
      %1898 = vmatprep.subr.bf16.mxu0 0
      %1899 = vmatpush1.bf16.msra.mxu0 0
      %1900 = vmatprep.mubr.bf16.mxu0 0
      %1901 = vmatmul.mubr.bf16.gmra.mrb[0].mxu0 %v906
      %v1902 = vpop.f32.mrb[0].mxu0
      %v1903 = vadd.f32 %v1742, %v1902
      %v1904 = vpop.f32.mrb[0].mxu0
      %v1905 = vpop.f32.mrb[0].mxu0
      %v1906 = vadd.f32 %v1745, %v1905
      %v1907 = vpop.f32.mrb[0].mxu0
      %1908 = vmatprep.mubr.bf16.mxu0 0
      %1909 = vmatmul.mubr.bf16.gmra.mrb[0].mxu0 %v909
      %v1910 = vpop.f32.mrb[0].mxu0
      %v1911 = vadd.f32 %v1750, %v1910
      %v1912 = vpop.f32.mrb[0].mxu0
      %v1913 = vpop.f32.mrb[0].mxu0
      %v1914 = vadd.f32 %v1753, %v1913
      %v1915 = vpop.f32.mrb[0].mxu0
      %1916 = vmatprep.mubr.bf16.mxu0 0
      %1917 = vmatmul.mubr.bf16.gmra.mrb[0].mxu0 %v912
      %v1918 = vpop.f32.mrb[0].mxu0
      %v1919 = vadd.f32 %v1758, %v1918
      %v1920 = vpop.f32.mrb[0].mxu0
      %v1921 = vpop.f32.mrb[0].mxu0
      %v1922 = vadd.f32 %v1761, %v1921
      %v1923 = vpop.f32.mrb[0].mxu0
      %1924 = vmatprep.mubr.bf16.mxu0 0
      %1925 = vmatmul.mubr.bf16.gmra.mrb[0].mxu0 %v915
      %v1926 = vpop.f32.mrb[0].mxu0
      %v1927 = vadd.f32 %v1766, %v1926
      %v1928 = vpop.f32.mrb[0].mxu0
      %v1929 = vpop.f32.mrb[0].mxu0
      %v1930 = vadd.f32 %v1769, %v1929
      %v1931 = vpop.f32.mrb[0].mxu0
      %1932 = vmatprep.mubr.bf16.mxu0 0
      %1933 = vmatmul.mubr.bf16.gmra.mrb[0].mxu0 %v918
      %v1934 = vpop.f32.mrb[0].mxu0
      %v1935 = vadd.f32 %v1774, %v1934
      %v1936 = vpop.f32.mrb[0].mxu0
      %v1937 = vpop.f32.mrb[0].mxu0
      %v1938 = vadd.f32 %v1777, %v1937
      %v1939 = vpop.f32.mrb[0].mxu0
      %1940 = vmatprep.mubr.bf16.mxu0 0
      %1941 = vmatmul.mubr.bf16.gmra.mrb[0].mxu0 %v921
      %v1942 = vpop.f32.mrb[0].mxu0
      %v1943 = vadd.f32 %v1782, %v1942
      %v1944 = vpop.f32.mrb[0].mxu0
      %v1945 = vpop.f32.mrb[0].mxu0
      %v1946 = vadd.f32 %v1785, %v1945
      %v1947 = vpop.f32.mrb[0].mxu0
      %1948 = vmatprep.mubr.bf16.mxu0 0
      %1949 = vmatmul.mubr.bf16.gmra.mrb[0].mxu0 %v924
      %v1950 = vpop.f32.mrb[0].mxu0
      %v1951 = vadd.f32 %v1790, %v1950
      %v1952 = vpop.f32.mrb[0].mxu0
      %v1953 = vpop.f32.mrb[0].mxu0
      %v1954 = vadd.f32 %v1793, %v1953
      %v1955 = vpop.f32.mrb[0].mxu0
      %1956 = vmatprep.mubr.bf16.mxu0 0
      %1957 = vmatmul.mubr.bf16.gmra.mrb[0].mxu0 %v927
      %v1958 = vpop.f32.mrb[0].mxu0
      %v1959 = vadd.f32 %v1798, %v1958
      %v1960 = vpop.f32.mrb[0].mxu0
      %v1961 = vpop.f32.mrb[0].mxu0
      %v1962 = vadd.f32 %v1801, %v1961
      %v1963 = vpop.f32.mrb[0].mxu0
      %1964 = vmatprep.mubr.bf16.mxu0 0
      %1965 = vmatmul.mubr.bf16.gmra.mrb[0].mxu0 %v930
      %v1966 = vpop.f32.mrb[0].mxu0
      %v1967 = vadd.f32 %v1806, %v1966
      %v1968 = vpop.f32.mrb[0].mxu0
      %v1969 = vpop.f32.mrb[0].mxu0
      %v1970 = vadd.f32 %v1809, %v1969
      %v1971 = vpop.f32.mrb[0].mxu0
      %1972 = vmatprep.mubr.bf16.mxu0 0
      %1973 = vmatmul.mubr.bf16.gmra.mrb[0].mxu0 %v933
      %v1974 = vpop.f32.mrb[0].mxu0
      %v1975 = vadd.f32 %v1814, %v1974
      %v1976 = vpop.f32.mrb[0].mxu0
      %v1977 = vpop.f32.mrb[0].mxu0
      %v1978 = vadd.f32 %v1817, %v1977
      %v1979 = vpop.f32.mrb[0].mxu0
      %1980 = vmatprep.mubr.bf16.mxu0 0
      %1981 = vmatmul.mubr.bf16.gmra.mrb[0].mxu0 %v936
      %v1982 = vpop.f32.mrb[0].mxu0
      %v1983 = vadd.f32 %v1822, %v1982
      %v1984 = vpop.f32.mrb[0].mxu0
      %v1985 = vpop.f32.mrb[0].mxu0
      %v1986 = vadd.f32 %v1825, %v1985
      %v1987 = vpop.f32.mrb[0].mxu0
      %1988 = vmatprep.mubr.bf16.mxu0 0
      %1989 = vmatmul.mubr.bf16.gmra.mrb[0].mxu0 %v939
      %v1990 = vpop.f32.mrb[0].mxu0
      %v1991 = vadd.f32 %v1830, %v1990
      %v1992 = vpop.f32.mrb[0].mxu0
      %v1993 = vpop.f32.mrb[0].mxu0
      %v1994 = vadd.f32 %v1833, %v1993
      %v1995 = vpop.f32.mrb[0].mxu0
      %1996 = vmatprep.mubr.bf16.mxu0 0
      %1997 = vmatmul.mubr.bf16.gmra.mrb[0].mxu0 %v942
      %v1998 = vpop.f32.mrb[0].mxu0
      %v1999 = vadd.f32 %v1838, %v1998
      %v2000 = vpop.f32.mrb[0].mxu0
      %v2001 = vpop.f32.mrb[0].mxu0
      %v2002 = vadd.f32 %v1841, %v2001
      %v2003 = vpop.f32.mrb[0].mxu0
      %2004 = vmatprep.mubr.bf16.mxu0 0
      %2005 = vmatmul.mubr.bf16.gmra.mrb[0].mxu0 %v945
      %v2006 = vpop.f32.mrb[0].mxu0
      %v2007 = vadd.f32 %v1846, %v2006
      %v2008 = vpop.f32.mrb[0].mxu0
      %v2009 = vpop.f32.mrb[0].mxu0
      %v2010 = vadd.f32 %v1849, %v2009
      %v2011 = vpop.f32.mrb[0].mxu0
      %2012 = vmatprep.mubr.bf16.mxu0 0
      %2013 = vmatmul.mubr.bf16.gmra.mrb[0].mxu0 %v948
      %v2014 = vpop.f32.mrb[0].mxu0
      %v2015 = vadd.f32 %v1854, %v2014
      %v2016 = vpop.f32.mrb[0].mxu0
      %v2017 = vpop.f32.mrb[0].mxu0
      %v2018 = vadd.f32 %v1857, %v2017
      %v2019 = vpop.f32.mrb[0].mxu0
      %2020 = vmatprep.mubr.bf16.mxu0 0
      %2021 = vmatmul.mubr.bf16.gmra.mrb[0].mxu0 %v951
      %v2022 = vpop.f32.mrb[0].mxu0
      %v2023 = vadd.f32 %v1862, %v2022
      %v2024 = vpop.f32.mrb[0].mxu0
      %v2025 = vpop.f32.mrb[0].mxu0
      %v2026 = vadd.f32 %v1865, %v2025
      %v2027 = vpop.f32.mrb[0].mxu0
      %2028 = vdwg.mxu0
      %s2029 = scalar_lea.vmem [#allocation2], 48
      %v2030 = vld [vmem:[%s2029] sm:$0xff]
      %v2031 = vld [vmem:[%s2029 + $0x8] sm:$0xff]
      %v2032 = vld [vmem:[%s2029 + $0x10] sm:$0xff]
      %v2033 = vld [vmem:[%s2029 + $0x18] sm:$0xff]
      %v2034 = vld [vmem:[%s2029 + $0x20] sm:$0xff]
      %v2035 = vld [vmem:[%s2029 + $0x28] sm:$0xff]
      %v2036 = vld [vmem:[%s2029 + $0x30] sm:$0xff]
      %v2037 = vld [vmem:[%s2029 + $0x38] sm:$0xff]
      %v2038 = vld [vmem:[%s2029 + $0x40] sm:$0xff]
      %v2039 = vld [vmem:[%s2029 + $0x48] sm:$0xff]
      %v2040 = vld [vmem:[%s2029 + $0x50] sm:$0xff]
      %v2041 = vld [vmem:[%s2029 + $0x58] sm:$0xff]
      %v2042 = vld [vmem:[%s2029 + $0x60] sm:$0xff]
      %v2043 = vld [vmem:[%s2029 + $0x68] sm:$0xff]
      %v2044 = vld [vmem:[%s2029 + $0x70] sm:$0xff]
      %v2045 = vld [vmem:[%s2029 + $0x78] sm:$0xff]
      %v2046 = vld [vmem:[%s2029 + $0x80] sm:$0xff]
      %v2047 = vld [vmem:[%s2029 + $0x88] sm:$0xff]
      %v2048 = vld [vmem:[%s2029 + $0x90] sm:$0xff]
      %v2049 = vld [vmem:[%s2029 + $0x98] sm:$0xff]
      %v2050 = vld [vmem:[%s2029 + $0xa0] sm:$0xff]
      %v2051 = vld [vmem:[%s2029 + $0xa8] sm:$0xff]
      %v2052 = vld [vmem:[%s2029 + $0xb0] sm:$0xff]
      %v2053 = vld [vmem:[%s2029 + $0xb8] sm:$0xff]
      %v2054 = vld [vmem:[%s2029 + $0xc0] sm:$0xff]
      %v2055 = vld [vmem:[%s2029 + $0xc8] sm:$0xff]
      %v2056 = vld [vmem:[%s2029 + $0xd0] sm:$0xff]
      %v2057 = vld [vmem:[%s2029 + $0xd8] sm:$0xff]
      %v2058 = vld [vmem:[%s2029 + $0xe0] sm:$0xff]
      %v2059 = vld [vmem:[%s2029 + $0xe8] sm:$0xff]
      %v2060 = vld [vmem:[%s2029 + $0xf0] sm:$0xff]
      %v2061 = vld [vmem:[%s2029 + $0xf8] sm:$0xff]
      %v2062 = vld [vmem:[%s2029 + $0x100] sm:$0xff]
      %v2063 = vld [vmem:[%s2029 + $0x108] sm:$0xff]
      %v2064 = vld [vmem:[%s2029 + $0x110] sm:$0xff]
      %v2065 = vld [vmem:[%s2029 + $0x118] sm:$0xff]
      %v2066 = vld [vmem:[%s2029 + $0x120] sm:$0xff]
      %v2067 = vld [vmem:[%s2029 + $0x128] sm:$0xff]
      %v2068 = vld [vmem:[%s2029 + $0x130] sm:$0xff]
      %v2069 = vld [vmem:[%s2029 + $0x138] sm:$0xff]
      %v2070 = vld [vmem:[%s2029 + $0x140] sm:$0xff]
      %v2071 = vld [vmem:[%s2029 + $0x148] sm:$0xff]
      %v2072 = vld [vmem:[%s2029 + $0x150] sm:$0xff]
      %v2073 = vld [vmem:[%s2029 + $0x158] sm:$0xff]
      %v2074 = vld [vmem:[%s2029 + $0x160] sm:$0xff]
      %v2075 = vld [vmem:[%s2029 + $0x168] sm:$0xff]
      %v2076 = vld [vmem:[%s2029 + $0x170] sm:$0xff]
      %v2077 = vld [vmem:[%s2029 + $0x178] sm:$0xff]
      %s2078 = scalar_lea.vmem %s3, 384
      %v2079 = vld [vmem:[%s2078] sm:$0xf]
      %v2080 = vld [vmem:[%s2078 + $0x4] sm:$0xf]
      %v2081 = vld [vmem:[%s2078 + $0x8] sm:$0xf]
      %v2082 = vld [vmem:[%s2078 + $0xc] sm:$0xf]
      %v2083 = vld [vmem:[%s2078 + $0x10] sm:$0xf]
      %v2084 = vld [vmem:[%s2078 + $0x14] sm:$0xf]
      %v2085 = vld [vmem:[%s2078 + $0x18] sm:$0xf]
      %v2086 = vld [vmem:[%s2078 + $0x1c] sm:$0xf]
      %v2087 = vld [vmem:[%s2078 + $0x20] sm:$0xf]
      %v2088 = vld [vmem:[%s2078 + $0x24] sm:$0xf]
      %v2089 = vld [vmem:[%s2078 + $0x28] sm:$0xf]
      %v2090 = vld [vmem:[%s2078 + $0x2c] sm:$0xf]
      %v2091 = vld [vmem:[%s2078 + $0x30] sm:$0xf]
      %v2092 = vld [vmem:[%s2078 + $0x34] sm:$0xf]
      %v2093 = vld [vmem:[%s2078 + $0x38] sm:$0xf]
      %v2094 = vld [vmem:[%s2078 + $0x3c] sm:$0xf]
      %v2095 = vld [vmem:[%s2078 + $0x40] sm:$0xf]
      %v2096 = vld [vmem:[%s2078 + $0x44] sm:$0xf]
      %v2097 = vld [vmem:[%s2078 + $0x48] sm:$0xf]
      %v2098 = vld [vmem:[%s2078 + $0x4c] sm:$0xf]
      %v2099 = vld [vmem:[%s2078 + $0x50] sm:$0xf]
      %v2100 = vld [vmem:[%s2078 + $0x54] sm:$0xf]
      %v2101 = vld [vmem:[%s2078 + $0x58] sm:$0xf]
      %v2102 = vld [vmem:[%s2078 + $0x5c] sm:$0xf]
      %v2103 = vld [vmem:[%s2078 + $0x60] sm:$0xf]
      %v2104 = vld [vmem:[%s2078 + $0x64] sm:$0xf]
      %v2105 = vld [vmem:[%s2078 + $0x68] sm:$0xf]
      %v2106 = vld [vmem:[%s2078 + $0x6c] sm:$0xf]
      %v2107 = vld [vmem:[%s2078 + $0x70] sm:$0xf]
      %v2108 = vld [vmem:[%s2078 + $0x74] sm:$0xf]
      %v2109 = vld [vmem:[%s2078 + $0x78] sm:$0xf]
      %v2110 = vld [vmem:[%s2078 + $0x7c] sm:$0xf]
      %v2111 = vld [vmem:[%s2078 + $0x80] sm:$0xf]
      %v2112 = vld [vmem:[%s2078 + $0x84] sm:$0xf]
      %v2113 = vld [vmem:[%s2078 + $0x88] sm:$0xf]
      %v2114 = vld [vmem:[%s2078 + $0x8c] sm:$0xf]
      %v2115 = vld [vmem:[%s2078 + $0x90] sm:$0xf]
      %v2116 = vld [vmem:[%s2078 + $0x94] sm:$0xf]
      %v2117 = vld [vmem:[%s2078 + $0x98] sm:$0xf]
      %v2118 = vld [vmem:[%s2078 + $0x9c] sm:$0xf]
      %v2119 = vld [vmem:[%s2078 + $0xa0] sm:$0xf]
      %v2120 = vld [vmem:[%s2078 + $0xa4] sm:$0xf]
      %v2121 = vld [vmem:[%s2078 + $0xa8] sm:$0xf]
      %v2122 = vld [vmem:[%s2078 + $0xac] sm:$0xf]
      %v2123 = vld [vmem:[%s2078 + $0xb0] sm:$0xf]
      %v2124 = vld [vmem:[%s2078 + $0xb4] sm:$0xf]
      %v2125 = vld [vmem:[%s2078 + $0xb8] sm:$0xf]
      %v2126 = vld [vmem:[%s2078 + $0xbc] sm:$0xf]
      %v2175 = vunpack.c.l.b16 %v2079
      %v2176 = vunpack.c.l.b16 %v2080
      %v2177 = vunpack.c.l.b16 %v2081
      %v2178 = vunpack.c.l.b16 %v2082
      %v2179 = vunpack.c.l.b16 %v2083
      %v2180 = vunpack.c.l.b16 %v2084
      %v2181 = vunpack.c.l.b16 %v2085
      %v2182 = vunpack.c.l.b16 %v2086
      %v2183 = vunpack.c.l.b16 %v2087
      %v2184 = vunpack.c.l.b16 %v2088
      %v2185 = vunpack.c.l.b16 %v2089
      %v2186 = vunpack.c.l.b16 %v2090
      %v2187 = vunpack.c.l.b16 %v2091
      %v2188 = vunpack.c.l.b16 %v2092
      %v2189 = vunpack.c.l.b16 %v2093
      %v2190 = vunpack.c.l.b16 %v2094
      %v2191 = vunpack.c.l.b16 %v2095
      %v2192 = vunpack.c.l.b16 %v2096
      %v2193 = vunpack.c.l.b16 %v2097
      %v2194 = vunpack.c.l.b16 %v2098
      %v2195 = vunpack.c.l.b16 %v2099
      %v2196 = vunpack.c.l.b16 %v2100
      %v2197 = vunpack.c.l.b16 %v2101
      %v2198 = vunpack.c.l.b16 %v2102
      %v2199 = vunpack.c.l.b16 %v2103
      %v2200 = vunpack.c.l.b16 %v2104
      %v2201 = vunpack.c.l.b16 %v2105
      %v2202 = vunpack.c.l.b16 %v2106
      %v2203 = vunpack.c.l.b16 %v2107
      %v2204 = vunpack.c.l.b16 %v2108
      %v2205 = vunpack.c.l.b16 %v2109
      %v2206 = vunpack.c.l.b16 %v2110
      %v2207 = vunpack.c.l.b16 %v2111
      %v2208 = vunpack.c.l.b16 %v2112
      %v2209 = vunpack.c.l.b16 %v2113
      %v2210 = vunpack.c.l.b16 %v2114
      %v2211 = vunpack.c.l.b16 %v2115
      %v2212 = vunpack.c.l.b16 %v2116
      %v2213 = vunpack.c.l.b16 %v2117
      %v2214 = vunpack.c.l.b16 %v2118
      %v2215 = vunpack.c.l.b16 %v2119
      %v2216 = vunpack.c.l.b16 %v2120
      %v2217 = vunpack.c.l.b16 %v2121
      %v2218 = vunpack.c.l.b16 %v2122
      %v2219 = vunpack.c.l.b16 %v2123
      %v2220 = vunpack.c.l.b16 %v2124
      %v2221 = vunpack.c.l.b16 %v2125
      %v2222 = vunpack.c.l.b16 %v2126
      %v2223 = vpack.c.b16 %v2176, %v2175
      %v2224 = vpack.c.b16 %v2178, %v2177
      %v2225 = vpack.c.b16 %v2180, %v2179
      %v2226 = vpack.c.b16 %v2182, %v2181
      %v2227 = vpack.c.b16 %v2184, %v2183
      %v2228 = vpack.c.b16 %v2186, %v2185
      %v2229 = vpack.c.b16 %v2188, %v2187
      %v2230 = vpack.c.b16 %v2190, %v2189
      %v2231 = vpack.c.b16 %v2192, %v2191
      %v2232 = vpack.c.b16 %v2194, %v2193
      %v2233 = vpack.c.b16 %v2196, %v2195
      %v2234 = vpack.c.b16 %v2198, %v2197
      %v2235 = vpack.c.b16 %v2200, %v2199
      %v2236 = vpack.c.b16 %v2202, %v2201
      %v2237 = vpack.c.b16 %v2204, %v2203
      %v2238 = vpack.c.b16 %v2206, %v2205
      %v2239 = vpack.c.b16 %v2208, %v2207
      %v2240 = vpack.c.b16 %v2210, %v2209
      %v2241 = vpack.c.b16 %v2212, %v2211
      %v2242 = vpack.c.b16 %v2214, %v2213
      %v2243 = vpack.c.b16 %v2216, %v2215
      %v2244 = vpack.c.b16 %v2218, %v2217
      %v2245 = vpack.c.b16 %v2220, %v2219
      %v2246 = vpack.c.b16 %v2222, %v2221
      %2271 = vmatprep.subr.bf16.mxu0 0
      %2272 = vmatpush1.bf16.msra.mxu0 %v2223
      %2273 = vmatprep.subr.bf16.mxu0 0
      %2274 = vmatpush1.bf16.msra.mxu0 %v2224
      %2275 = vmatprep.subr.bf16.mxu0 0
      %2276 = vmatpush1.bf16.msra.mxu0 %v2225
      %2277 = vmatprep.subr.bf16.mxu0 0
      %2278 = vmatpush1.bf16.msra.mxu0 %v2226
      %2279 = vmatprep.subr.bf16.mxu0 0
      %2280 = vmatpush1.bf16.msra.mxu0 %v2227
      %2281 = vmatprep.subr.bf16.mxu0 0
      %2282 = vmatpush1.bf16.msra.mxu0 %v2228
      %2283 = vmatprep.subr.bf16.mxu0 0
      %2284 = vmatpush1.bf16.msra.mxu0 %v2229
      %2285 = vmatprep.subr.bf16.mxu0 0
      %2286 = vmatpush1.bf16.msra.mxu0 %v2230
      %2287 = vmatprep.subr.bf16.mxu0 0
      %2288 = vmatpush1.bf16.msra.mxu0 %v2231
      %2289 = vmatprep.subr.bf16.mxu0 0
      %2290 = vmatpush1.bf16.msra.mxu0 %v2232
      %2291 = vmatprep.subr.bf16.mxu0 0
      %2292 = vmatpush1.bf16.msra.mxu0 %v2233
      %2293 = vmatprep.subr.bf16.mxu0 0
      %2294 = vmatpush1.bf16.msra.mxu0 %v2234
      %2295 = vmatprep.subr.bf16.mxu0 0
      %2296 = vmatpush1.bf16.msra.mxu0 %v2235
      %2297 = vmatprep.subr.bf16.mxu0 0
      %2298 = vmatpush1.bf16.msra.mxu0 %v2236
      %2299 = vmatprep.subr.bf16.mxu0 0
      %2300 = vmatpush1.bf16.msra.mxu0 %v2237
      %2301 = vmatprep.subr.bf16.mxu0 0
      %2302 = vmatpush1.bf16.msra.mxu0 %v2238
      %2303 = vmatprep.mubr.bf16.mxu0 %v2031
      %2304 = vmatmul.mubr.bf16.gmra.mrb[0].mxu0 %v2030
      %v2305 = vpop.f32.mrb[0].mxu0
      %v2306 = vadd.f32 0.0, %v2305
      %v2307 = vpop.f32.mrb[0].mxu0
      %v2308 = vpop.f32.mrb[0].mxu0
      %v2309 = vadd.f32 0.0, %v2308
      %v2310 = vpop.f32.mrb[0].mxu0
      %2311 = vmatprep.mubr.bf16.mxu0 %v2034
      %2312 = vmatmul.mubr.bf16.gmra.mrb[0].mxu0 %v2033
      %v2313 = vpop.f32.mrb[0].mxu0
      %v2314 = vadd.f32 0.0, %v2313
      %v2315 = vpop.f32.mrb[0].mxu0
      %v2316 = vpop.f32.mrb[0].mxu0
      %v2317 = vadd.f32 0.0, %v2316
      %v2318 = vpop.f32.mrb[0].mxu0
      %2319 = vmatprep.mubr.bf16.mxu0 %v2037
      %2320 = vmatmul.mubr.bf16.gmra.mrb[0].mxu0 %v2036
      %v2321 = vpop.f32.mrb[0].mxu0
      %v2322 = vadd.f32 0.0, %v2321
      %v2323 = vpop.f32.mrb[0].mxu0
      %v2324 = vpop.f32.mrb[0].mxu0
      %v2325 = vadd.f32 0.0, %v2324
      %v2326 = vpop.f32.mrb[0].mxu0
      %2327 = vmatprep.mubr.bf16.mxu0 %v2040
      %2328 = vmatmul.mubr.bf16.gmra.mrb[0].mxu0 %v2039
      %v2329 = vpop.f32.mrb[0].mxu0
      %v2330 = vadd.f32 0.0, %v2329
      %v2331 = vpop.f32.mrb[0].mxu0
      %v2332 = vpop.f32.mrb[0].mxu0
      %v2333 = vadd.f32 0.0, %v2332
      %v2334 = vpop.f32.mrb[0].mxu0
      %2335 = vmatprep.mubr.bf16.mxu0 %v2043
      %2336 = vmatmul.mubr.bf16.gmra.mrb[0].mxu0 %v2042
      %v2337 = vpop.f32.mrb[0].mxu0
      %v2338 = vadd.f32 0.0, %v2337
      %v2339 = vpop.f32.mrb[0].mxu0
      %v2340 = vpop.f32.mrb[0].mxu0
      %v2341 = vadd.f32 0.0, %v2340
      %v2342 = vpop.f32.mrb[0].mxu0
      %2343 = vmatprep.mubr.bf16.mxu0 %v2046
      %2344 = vmatmul.mubr.bf16.gmra.mrb[0].mxu0 %v2045
      %v2345 = vpop.f32.mrb[0].mxu0
      %v2346 = vadd.f32 0.0, %v2345
      %v2347 = vpop.f32.mrb[0].mxu0
      %v2348 = vpop.f32.mrb[0].mxu0
      %v2349 = vadd.f32 0.0, %v2348
      %v2350 = vpop.f32.mrb[0].mxu0
      %2351 = vmatprep.mubr.bf16.mxu0 %v2049
      %2352 = vmatmul.mubr.bf16.gmra.mrb[0].mxu0 %v2048
      %v2353 = vpop.f32.mrb[0].mxu0
      %v2354 = vadd.f32 0.0, %v2353
      %v2355 = vpop.f32.mrb[0].mxu0
      %v2356 = vpop.f32.mrb[0].mxu0
      %v2357 = vadd.f32 0.0, %v2356
      %v2358 = vpop.f32.mrb[0].mxu0
      %2359 = vmatprep.mubr.bf16.mxu0 %v2052
      %2360 = vmatmul.mubr.bf16.gmra.mrb[0].mxu0 %v2051
      %v2361 = vpop.f32.mrb[0].mxu0
      %v2362 = vadd.f32 0.0, %v2361
      %v2363 = vpop.f32.mrb[0].mxu0
      %v2364 = vpop.f32.mrb[0].mxu0
      %v2365 = vadd.f32 0.0, %v2364
      %v2366 = vpop.f32.mrb[0].mxu0
      %2367 = vmatprep.mubr.bf16.mxu0 %v2055
      %2368 = vmatmul.mubr.bf16.gmra.mrb[0].mxu0 %v2054
      %v2369 = vpop.f32.mrb[0].mxu0
      %v2370 = vadd.f32 0.0, %v2369
      %v2371 = vpop.f32.mrb[0].mxu0
      %v2372 = vpop.f32.mrb[0].mxu0
      %v2373 = vadd.f32 0.0, %v2372
      %v2374 = vpop.f32.mrb[0].mxu0
      %2375 = vmatprep.mubr.bf16.mxu0 %v2058
      %2376 = vmatmul.mubr.bf16.gmra.mrb[0].mxu0 %v2057
      %v2377 = vpop.f32.mrb[0].mxu0
      %v2378 = vadd.f32 0.0, %v2377
      %v2379 = vpop.f32.mrb[0].mxu0
      %v2380 = vpop.f32.mrb[0].mxu0
      %v2381 = vadd.f32 0.0, %v2380
      %v2382 = vpop.f32.mrb[0].mxu0
      %2383 = vmatprep.mubr.bf16.mxu0 %v2061
      %2384 = vmatmul.mubr.bf16.gmra.mrb[0].mxu0 %v2060
      %v2385 = vpop.f32.mrb[0].mxu0
      %v2386 = vadd.f32 0.0, %v2385
      %v2387 = vpop.f32.mrb[0].mxu0
      %v2388 = vpop.f32.mrb[0].mxu0
      %v2389 = vadd.f32 0.0, %v2388
      %v2390 = vpop.f32.mrb[0].mxu0
      %2391 = vmatprep.mubr.bf16.mxu0 %v2064
      %2392 = vmatmul.mubr.bf16.gmra.mrb[0].mxu0 %v2063
      %v2393 = vpop.f32.mrb[0].mxu0
      %v2394 = vadd.f32 0.0, %v2393
      %v2395 = vpop.f32.mrb[0].mxu0
      %v2396 = vpop.f32.mrb[0].mxu0
      %v2397 = vadd.f32 0.0, %v2396
      %v2398 = vpop.f32.mrb[0].mxu0
      %2399 = vmatprep.mubr.bf16.mxu0 %v2067
      %2400 = vmatmul.mubr.bf16.gmra.mrb[0].mxu0 %v2066
      %v2401 = vpop.f32.mrb[0].mxu0
      %v2402 = vadd.f32 0.0, %v2401
      %v2403 = vpop.f32.mrb[0].mxu0
      %v2404 = vpop.f32.mrb[0].mxu0
      %v2405 = vadd.f32 0.0, %v2404
      %v2406 = vpop.f32.mrb[0].mxu0
      %2407 = vmatprep.mubr.bf16.mxu0 %v2070
      %2408 = vmatmul.mubr.bf16.gmra.mrb[0].mxu0 %v2069
      %v2409 = vpop.f32.mrb[0].mxu0
      %v2410 = vadd.f32 0.0, %v2409
      %v2411 = vpop.f32.mrb[0].mxu0
      %v2412 = vpop.f32.mrb[0].mxu0
      %v2413 = vadd.f32 0.0, %v2412
      %v2414 = vpop.f32.mrb[0].mxu0
      %2415 = vmatprep.mubr.bf16.mxu0 %v2073
      %2416 = vmatmul.mubr.bf16.gmra.mrb[0].mxu0 %v2072
      %v2417 = vpop.f32.mrb[0].mxu0
      %v2418 = vadd.f32 0.0, %v2417
      %v2419 = vpop.f32.mrb[0].mxu0
      %v2420 = vpop.f32.mrb[0].mxu0
      %v2421 = vadd.f32 0.0, %v2420
      %v2422 = vpop.f32.mrb[0].mxu0
      %2423 = vmatprep.mubr.bf16.mxu0 %v2076
      %2424 = vmatmul.mubr.bf16.gmra.mrb[0].mxu0 %v2075
      %v2425 = vpop.f32.mrb[0].mxu0
      %v2426 = vadd.f32 0.0, %v2425
      %v2427 = vpop.f32.mrb[0].mxu0
      %v2428 = vpop.f32.mrb[0].mxu0
      %v2429 = vadd.f32 0.0, %v2428
      %v2430 = vpop.f32.mrb[0].mxu0
      %2431 = vdwg.mxu0
      %2432 = vmatprep.subr.bf16.mxu0 0
      %2433 = vmatpush1.bf16.msra.mxu0 %v2239
      %2434 = vmatprep.subr.bf16.mxu0 0
      %2435 = vmatpush1.bf16.msra.mxu0 %v2240
      %2436 = vmatprep.subr.bf16.mxu0 0
      %2437 = vmatpush1.bf16.msra.mxu0 %v2241
      %2438 = vmatprep.subr.bf16.mxu0 0
      %2439 = vmatpush1.bf16.msra.mxu0 %v2242
      %2440 = vmatprep.subr.bf16.mxu0 0
      %2441 = vmatpush1.bf16.msra.mxu0 %v2243
      %2442 = vmatprep.subr.bf16.mxu0 0
      %2443 = vmatpush1.bf16.msra.mxu0 %v2244
      %2444 = vmatprep.subr.bf16.mxu0 0
      %2445 = vmatpush1.bf16.msra.mxu0 %v2245
      %2446 = vmatprep.subr.bf16.mxu0 0
      %2447 = vmatpush1.bf16.msra.mxu0 %v2246
      %2448 = vmatprep.subr.bf16.mxu0 0
      %2449 = vmatpush1.bf16.msra.mxu0 0
      %2450 = vmatprep.subr.bf16.mxu0 0
      %2451 = vmatpush1.bf16.msra.mxu0 0
      %2452 = vmatprep.subr.bf16.mxu0 0
      %2453 = vmatpush1.bf16.msra.mxu0 0
      %2454 = vmatprep.subr.bf16.mxu0 0
      %2455 = vmatpush1.bf16.msra.mxu0 0
      %2456 = vmatprep.subr.bf16.mxu0 0
      %2457 = vmatpush1.bf16.msra.mxu0 0
      %2458 = vmatprep.subr.bf16.mxu0 0
      %2459 = vmatpush1.bf16.msra.mxu0 0
      %2460 = vmatprep.subr.bf16.mxu0 0
      %2461 = vmatpush1.bf16.msra.mxu0 0
      %2462 = vmatprep.subr.bf16.mxu0 0
      %2463 = vmatpush1.bf16.msra.mxu0 0
      %2464 = vmatprep.mubr.bf16.mxu0 0
      %2465 = vmatmul.mubr.bf16.gmra.mrb[0].mxu0 %v2032
      %v2466 = vpop.f32.mrb[0].mxu0
      %v2467 = vadd.f32 %v2306, %v2466
      %v2468 = vpop.f32.mrb[0].mxu0
      %v2469 = vpop.f32.mrb[0].mxu0
      %v2470 = vadd.f32 %v2309, %v2469
      %v2471 = vpop.f32.mrb[0].mxu0
      %2472 = vmatprep.mubr.bf16.mxu0 0
      %2473 = vmatmul.mubr.bf16.gmra.mrb[0].mxu0 %v2035
      %v2474 = vpop.f32.mrb[0].mxu0
      %v2475 = vadd.f32 %v2314, %v2474
      %v2476 = vpop.f32.mrb[0].mxu0
      %v2477 = vpop.f32.mrb[0].mxu0
      %v2478 = vadd.f32 %v2317, %v2477
      %v2479 = vpop.f32.mrb[0].mxu0
      %2480 = vmatprep.mubr.bf16.mxu0 0
      %2481 = vmatmul.mubr.bf16.gmra.mrb[0].mxu0 %v2038
      %v2482 = vpop.f32.mrb[0].mxu0
      %v2483 = vadd.f32 %v2322, %v2482
      %v2484 = vpop.f32.mrb[0].mxu0
      %v2485 = vpop.f32.mrb[0].mxu0
      %v2486 = vadd.f32 %v2325, %v2485
      %v2487 = vpop.f32.mrb[0].mxu0
      %2488 = vmatprep.mubr.bf16.mxu0 0
      %2489 = vmatmul.mubr.bf16.gmra.mrb[0].mxu0 %v2041
      %v2490 = vpop.f32.mrb[0].mxu0
      %v2491 = vadd.f32 %v2330, %v2490
      %v2492 = vpop.f32.mrb[0].mxu0
      %v2493 = vpop.f32.mrb[0].mxu0
      %v2494 = vadd.f32 %v2333, %v2493
      %v2495 = vpop.f32.mrb[0].mxu0
      %2496 = vmatprep.mubr.bf16.mxu0 0
      %2497 = vmatmul.mubr.bf16.gmra.mrb[0].mxu0 %v2044
      %v2498 = vpop.f32.mrb[0].mxu0
      %v2499 = vadd.f32 %v2338, %v2498
      %v2500 = vpop.f32.mrb[0].mxu0
      %v2501 = vpop.f32.mrb[0].mxu0
      %v2502 = vadd.f32 %v2341, %v2501
      %v2503 = vpop.f32.mrb[0].mxu0
      %2504 = vmatprep.mubr.bf16.mxu0 0
      %2505 = vmatmul.mubr.bf16.gmra.mrb[0].mxu0 %v2047
      %v2506 = vpop.f32.mrb[0].mxu0
      %v2507 = vadd.f32 %v2346, %v2506
      %v2508 = vpop.f32.mrb[0].mxu0
      %v2509 = vpop.f32.mrb[0].mxu0
      %v2510 = vadd.f32 %v2349, %v2509
      %v2511 = vpop.f32.mrb[0].mxu0
      %2512 = vmatprep.mubr.bf16.mxu0 0
      %2513 = vmatmul.mubr.bf16.gmra.mrb[0].mxu0 %v2050
      %v2514 = vpop.f32.mrb[0].mxu0
      %v2515 = vadd.f32 %v2354, %v2514
      %v2516 = vpop.f32.mrb[0].mxu0
      %v2517 = vpop.f32.mrb[0].mxu0
      %v2518 = vadd.f32 %v2357, %v2517
      %v2519 = vpop.f32.mrb[0].mxu0
      %2520 = vmatprep.mubr.bf16.mxu0 0
      %2521 = vmatmul.mubr.bf16.gmra.mrb[0].mxu0 %v2053
      %v2522 = vpop.f32.mrb[0].mxu0
      %v2523 = vadd.f32 %v2362, %v2522
      %v2524 = vpop.f32.mrb[0].mxu0
      %v2525 = vpop.f32.mrb[0].mxu0
      %v2526 = vadd.f32 %v2365, %v2525
      %v2527 = vpop.f32.mrb[0].mxu0
      %2528 = vmatprep.mubr.bf16.mxu0 0
      %2529 = vmatmul.mubr.bf16.gmra.mrb[0].mxu0 %v2056
      %v2530 = vpop.f32.mrb[0].mxu0
      %v2531 = vadd.f32 %v2370, %v2530
      %v2532 = vpop.f32.mrb[0].mxu0
      %v2533 = vpop.f32.mrb[0].mxu0
      %v2534 = vadd.f32 %v2373, %v2533
      %v2535 = vpop.f32.mrb[0].mxu0
      %2536 = vmatprep.mubr.bf16.mxu0 0
      %2537 = vmatmul.mubr.bf16.gmra.mrb[0].mxu0 %v2059
      %v2538 = vpop.f32.mrb[0].mxu0
      %v2539 = vadd.f32 %v2378, %v2538
      %v2540 = vpop.f32.mrb[0].mxu0
      %v2541 = vpop.f32.mrb[0].mxu0
      %v2542 = vadd.f32 %v2381, %v2541
      %v2543 = vpop.f32.mrb[0].mxu0
      %2544 = vmatprep.mubr.bf16.mxu0 0
      %2545 = vmatmul.mubr.bf16.gmra.mrb[0].mxu0 %v2062
      %v2546 = vpop.f32.mrb[0].mxu0
      %v2547 = vadd.f32 %v2386, %v2546
      %v2548 = vpop.f32.mrb[0].mxu0
      %v2549 = vpop.f32.mrb[0].mxu0
      %v2550 = vadd.f32 %v2389, %v2549
      %v2551 = vpop.f32.mrb[0].mxu0
      %2552 = vmatprep.mubr.bf16.mxu0 0
      %2553 = vmatmul.mubr.bf16.gmra.mrb[0].mxu0 %v2065
      %v2554 = vpop.f32.mrb[0].mxu0
      %v2555 = vadd.f32 %v2394, %v2554
      %v2556 = vpop.f32.mrb[0].mxu0
      %v2557 = vpop.f32.mrb[0].mxu0
      %v2558 = vadd.f32 %v2397, %v2557
      %v2559 = vpop.f32.mrb[0].mxu0
      %2560 = vmatprep.mubr.bf16.mxu0 0
      %2561 = vmatmul.mubr.bf16.gmra.mrb[0].mxu0 %v2068
      %v2562 = vpop.f32.mrb[0].mxu0
      %v2563 = vadd.f32 %v2402, %v2562
      %v2564 = vpop.f32.mrb[0].mxu0
      %v2565 = vpop.f32.mrb[0].mxu0
      %v2566 = vadd.f32 %v2405, %v2565
      %v2567 = vpop.f32.mrb[0].mxu0
      %2568 = vmatprep.mubr.bf16.mxu0 0
      %2569 = vmatmul.mubr.bf16.gmra.mrb[0].mxu0 %v2071
      %v2570 = vpop.f32.mrb[0].mxu0
      %v2571 = vadd.f32 %v2410, %v2570
      %v2572 = vpop.f32.mrb[0].mxu0
      %v2573 = vpop.f32.mrb[0].mxu0
      %v2574 = vadd.f32 %v2413, %v2573
      %v2575 = vpop.f32.mrb[0].mxu0
      %2576 = vmatprep.mubr.bf16.mxu0 0
      %2577 = vmatmul.mubr.bf16.gmra.mrb[0].mxu0 %v2074
      %v2578 = vpop.f32.mrb[0].mxu0
      %v2579 = vadd.f32 %v2418, %v2578
      %v2580 = vpop.f32.mrb[0].mxu0
      %v2581 = vpop.f32.mrb[0].mxu0
      %v2582 = vadd.f32 %v2421, %v2581
      %v2583 = vpop.f32.mrb[0].mxu0
      %2584 = vmatprep.mubr.bf16.mxu0 0
      %2585 = vmatmul.mubr.bf16.gmra.mrb[0].mxu0 %v2077
      %v2586 = vpop.f32.mrb[0].mxu0
      %v2587 = vadd.f32 %v2426, %v2586
      %v2588 = vpop.f32.mrb[0].mxu0
      %v2589 = vpop.f32.mrb[0].mxu0
      %v2590 = vadd.f32 %v2429, %v2589
      %v2591 = vpop.f32.mrb[0].mxu0
      %2592 = vdwg.mxu0
      %v2593 = vadd.f32 %v1903, %v2467
      %v2594 = vadd.f32 %v1906, %v2470
      %v2595 = vadd.f32 %v1911, %v2475
      %v2596 = vadd.f32 %v1914, %v2478
      %v2597 = vadd.f32 %v1919, %v2483
      %v2598 = vadd.f32 %v1922, %v2486
      %v2599 = vadd.f32 %v1927, %v2491
      %v2600 = vadd.f32 %v1930, %v2494
      %v2601 = vadd.f32 %v1935, %v2499
      %v2602 = vadd.f32 %v1938, %v2502
      %v2603 = vadd.f32 %v1943, %v2507
      %v2604 = vadd.f32 %v1946, %v2510
      %v2605 = vadd.f32 %v1951, %v2515
      %v2606 = vadd.f32 %v1954, %v2518
      %v2607 = vadd.f32 %v1959, %v2523
      %v2608 = vadd.f32 %v1962, %v2526
      %v2609 = vadd.f32 %v1967, %v2531
      %v2610 = vadd.f32 %v1970, %v2534
      %v2611 = vadd.f32 %v1975, %v2539
      %v2612 = vadd.f32 %v1978, %v2542
      %v2613 = vadd.f32 %v1983, %v2547
      %v2614 = vadd.f32 %v1986, %v2550
      %v2615 = vadd.f32 %v1991, %v2555
      %v2616 = vadd.f32 %v1994, %v2558
      %v2617 = vadd.f32 %v1999, %v2563
      %v2618 = vadd.f32 %v2002, %v2566
      %v2619 = vadd.f32 %v2007, %v2571
      %v2620 = vadd.f32 %v2010, %v2574
      %v2621 = vadd.f32 %v2015, %v2579
      %v2622 = vadd.f32 %v2018, %v2582
      %v2623 = vadd.f32 %v2023, %v2587
      %v2624 = vadd.f32 %v2026, %v2590
      %v2625 = vld [vmem:[%s4] sm:$0x1]
      %v2627 = vlaneseq
      %v2628 = vshrl.u32 %v2627, 7
      %v2629 = vsub.s32 0, %v2628
      %v2630 = vrot.slane %v2625, %v2629
      %v2632 = vadd.f32 %v2593, %v2630
      %v2633 = vadd.f32 %v2594, %v2630
      %v2634 = vadd.f32 %v2595, %v2630
      %v2635 = vadd.f32 %v2596, %v2630
      %v2636 = vadd.f32 %v2597, %v2630
      %v2637 = vadd.f32 %v2598, %v2630
      %v2638 = vadd.f32 %v2599, %v2630
      %v2639 = vadd.f32 %v2600, %v2630
      %v2640 = vadd.f32 %v2601, %v2630
      %v2641 = vadd.f32 %v2602, %v2630
      %v2642 = vadd.f32 %v2603, %v2630
      %v2643 = vadd.f32 %v2604, %v2630
      %v2644 = vadd.f32 %v2605, %v2630
      %v2645 = vadd.f32 %v2606, %v2630
      %v2646 = vadd.f32 %v2607, %v2630
      %v2647 = vadd.f32 %v2608, %v2630
      %v2648 = vadd.f32 %v2609, %v2630
      %v2649 = vadd.f32 %v2610, %v2630
      %v2650 = vadd.f32 %v2611, %v2630
      %v2651 = vadd.f32 %v2612, %v2630
      %v2652 = vadd.f32 %v2613, %v2630
      %v2653 = vadd.f32 %v2614, %v2630
      %v2654 = vadd.f32 %v2615, %v2630
      %v2655 = vadd.f32 %v2616, %v2630
      %v2656 = vadd.f32 %v2617, %v2630
      %v2657 = vadd.f32 %v2618, %v2630
      %v2658 = vadd.f32 %v2619, %v2630
      %v2659 = vadd.f32 %v2620, %v2630
      %v2660 = vadd.f32 %v2621, %v2630
      %v2661 = vadd.f32 %v2622, %v2630
      %v2662 = vadd.f32 %v2623, %v2630
      %v2663 = vadd.f32 %v2624, %v2630
      %v2664 = vunpack.c.l.bf16 %v226
      %v2665 = vunpack.c.l.bf16 %v227
      %v2666 = vunpack.c.l.bf16 %v228
      %v2667 = vunpack.c.l.bf16 %v229
      %v2668 = vunpack.c.l.bf16 %v230
      %v2669 = vunpack.c.l.bf16 %v231
      %v2670 = vunpack.c.l.bf16 %v232
      %v2671 = vunpack.c.l.bf16 %v233
      %v2672 = vunpack.c.l.bf16 %v234
      %v2673 = vunpack.c.l.bf16 %v235
      %v2674 = vunpack.c.l.bf16 %v236
      %v2675 = vunpack.c.l.bf16 %v237
      %v2676 = vunpack.c.l.bf16 %v238
      %v2677 = vunpack.c.l.bf16 %v239
      %v2678 = vunpack.c.l.bf16 %v240
      %v2679 = vunpack.c.l.bf16 %v241
      %v2680 = vunpack.c.l.bf16 %v242
      %v2681 = vunpack.c.l.bf16 %v243
      %v2682 = vunpack.c.l.bf16 %v244
      %v2683 = vunpack.c.l.bf16 %v245
      %v2684 = vunpack.c.l.bf16 %v246
      %v2685 = vunpack.c.l.bf16 %v247
      %v2686 = vunpack.c.l.bf16 %v248
      %v2687 = vunpack.c.l.bf16 %v249
      %v2688 = vunpack.c.l.bf16 %v250
      %v2689 = vunpack.c.l.bf16 %v251
      %v2690 = vunpack.c.l.bf16 %v252
      %v2691 = vunpack.c.l.bf16 %v253
      %v2692 = vunpack.c.l.bf16 %v254
      %v2693 = vunpack.c.l.bf16 %v255
      %v2694 = vunpack.c.l.bf16 %v256
      %v2695 = vunpack.c.l.bf16 %v257
      %v2696 = vadd.f32 %v2632, %v2664
      %v2697 = vadd.f32 %v2633, %v2665
      %v2698 = vadd.f32 %v2634, %v2666
      %v2699 = vadd.f32 %v2635, %v2667
      %v2700 = vadd.f32 %v2636, %v2668
      %v2701 = vadd.f32 %v2637, %v2669
      %v2702 = vadd.f32 %v2638, %v2670
      %v2703 = vadd.f32 %v2639, %v2671
      %v2704 = vadd.f32 %v2640, %v2672
      %v2705 = vadd.f32 %v2641, %v2673
      %v2706 = vadd.f32 %v2642, %v2674
      %v2707 = vadd.f32 %v2643, %v2675
      %v2708 = vadd.f32 %v2644, %v2676
      %v2709 = vadd.f32 %v2645, %v2677
      %v2710 = vadd.f32 %v2646, %v2678
      %v2711 = vadd.f32 %v2647, %v2679
      %v2712 = vadd.f32 %v2648, %v2680
      %v2713 = vadd.f32 %v2649, %v2681
      %v2714 = vadd.f32 %v2650, %v2682
      %v2715 = vadd.f32 %v2651, %v2683
      %v2716 = vadd.f32 %v2652, %v2684
      %v2717 = vadd.f32 %v2653, %v2685
      %v2718 = vadd.f32 %v2654, %v2686
      %v2719 = vadd.f32 %v2655, %v2687
      %v2720 = vadd.f32 %v2656, %v2688
      %v2721 = vadd.f32 %v2657, %v2689
      %v2722 = vadd.f32 %v2658, %v2690
      %v2723 = vadd.f32 %v2659, %v2691
      %v2724 = vadd.f32 %v2660, %v2692
      %v2725 = vadd.f32 %v2661, %v2693
      %v2726 = vadd.f32 %v2662, %v2694
      %v2727 = vadd.f32 %v2663, %v2695
      %v2728 = vmax.f32 %v2696, 0.0
      %v2729 = vmax.f32 %v2697, 0.0
      %v2730 = vmax.f32 %v2698, 0.0
      %v2731 = vmax.f32 %v2699, 0.0
      %v2732 = vmax.f32 %v2700, 0.0
      %v2733 = vmax.f32 %v2701, 0.0
      %v2734 = vmax.f32 %v2702, 0.0
      %v2735 = vmax.f32 %v2703, 0.0
      %v2736 = vmax.f32 %v2704, 0.0
      %v2737 = vmax.f32 %v2705, 0.0
      %v2738 = vmax.f32 %v2706, 0.0
      %v2739 = vmax.f32 %v2707, 0.0
      %v2740 = vmax.f32 %v2708, 0.0
      %v2741 = vmax.f32 %v2709, 0.0
      %v2742 = vmax.f32 %v2710, 0.0
      %v2743 = vmax.f32 %v2711, 0.0
      %v2744 = vmax.f32 %v2712, 0.0
      %v2745 = vmax.f32 %v2713, 0.0
      %v2746 = vmax.f32 %v2714, 0.0
      %v2747 = vmax.f32 %v2715, 0.0
      %v2748 = vmax.f32 %v2716, 0.0
      %v2749 = vmax.f32 %v2717, 0.0
      %v2750 = vmax.f32 %v2718, 0.0
      %v2751 = vmax.f32 %v2719, 0.0
      %v2752 = vmax.f32 %v2720, 0.0
      %v2753 = vmax.f32 %v2721, 0.0
      %v2754 = vmax.f32 %v2722, 0.0
      %v2755 = vmax.f32 %v2723, 0.0
      %v2756 = vmax.f32 %v2724, 0.0
      %v2757 = vmax.f32 %v2725, 0.0
      %v2758 = vmax.f32 %v2726, 0.0
      %v2759 = vmax.f32 %v2727, 0.0
      %2760 = vst [vmem:[%s224] sm:$0xff] %v2728
      %2761 = vst [vmem:[%s224 + $0x8] sm:$0xff] %v2729
      %2762 = vst [vmem:[%s224 + $0x10] sm:$0xff] %v2730
      %2763 = vst [vmem:[%s224 + $0x18] sm:$0xff] %v2731
      %2764 = vst [vmem:[%s224 + $0x20] sm:$0xff] %v2732
      %2765 = vst [vmem:[%s224 + $0x28] sm:$0xff] %v2733
      %2766 = vst [vmem:[%s224 + $0x30] sm:$0xff] %v2734
      %2767 = vst [vmem:[%s224 + $0x38] sm:$0xff] %v2735
      %2768 = vst [vmem:[%s224 + $0x40] sm:$0xff] %v2736
      %2769 = vst [vmem:[%s224 + $0x48] sm:$0xff] %v2737
      %2770 = vst [vmem:[%s224 + $0x50] sm:$0xff] %v2738
      %2771 = vst [vmem:[%s224 + $0x58] sm:$0xff] %v2739
      %2772 = vst [vmem:[%s224 + $0x60] sm:$0xff] %v2740
      %2773 = vst [vmem:[%s224 + $0x68] sm:$0xff] %v2741
      %2774 = vst [vmem:[%s224 + $0x70] sm:$0xff] %v2742
      %2775 = vst [vmem:[%s224 + $0x78] sm:$0xff] %v2743
      %2776 = vst [vmem:[%s224 + $0x80] sm:$0xff] %v2744
      %2777 = vst [vmem:[%s224 + $0x88] sm:$0xff] %v2745
      %2778 = vst [vmem:[%s224 + $0x90] sm:$0xff] %v2746
      %2779 = vst [vmem:[%s224 + $0x98] sm:$0xff] %v2747
      %2780 = vst [vmem:[%s224 + $0xa0] sm:$0xff] %v2748
      %2781 = vst [vmem:[%s224 + $0xa8] sm:$0xff] %v2749
      %2782 = vst [vmem:[%s224 + $0xb0] sm:$0xff] %v2750
      %2783 = vst [vmem:[%s224 + $0xb8] sm:$0xff] %v2751
      %2784 = vst [vmem:[%s224 + $0xc0] sm:$0xff] %v2752
      %2785 = vst [vmem:[%s224 + $0xc8] sm:$0xff] %v2753
      %2786 = vst [vmem:[%s224 + $0xd0] sm:$0xff] %v2754
      %2787 = vst [vmem:[%s224 + $0xd8] sm:$0xff] %v2755
      %2788 = vst [vmem:[%s224 + $0xe0] sm:$0xff] %v2756
      %2789 = vst [vmem:[%s224 + $0xe8] sm:$0xff] %v2757
      %2790 = vst [vmem:[%s224 + $0xf0] sm:$0xff] %v2758
      %2791 = vst [vmem:[%s224 + $0xf8] sm:$0xff] %v2759
      %p2792 = scmp.lt.s32.totalorder %s16, 1
      %s2793 = scalar_select %p2792, %s16, 1
      %s2794 = smul.addr %s2793, 32
      %s2795 = smul.addr %s2794, 8
      %s2796 = scalar_lea.vmem %s5, %s2795
      // Predicated region
      $region41: #{basic_block_forward.1} parent=39 // pred_check
        %p2797 = pneg %p144
      $region42: #{basic_block_forward.1} parent=39 // pred_check_branch
        %2799 = sbr.rel (%p2797) target = $region44
      $region43: #{basic_block_forward.1} parent=39 // pred_region
        _
      $region44: #{basic_block_forward.1} parent=39 // pred_fallthru
        _
    $region40: #{basic_block_forward.1} parent=5 // pred_fallthru
      _
    %p2800 = scmp.le.s32.totalorder 2, %s11
    // Predicated region
    $region45: #{basic_block_forward.1} parent=5 // pred_check
      %p2801 = pneg %p2800
    $region46: #{basic_block_forward.1} parent=5 // pred_check_branch
      %2803 = sbr.rel (%p2801) target = $region48
    $region47: #{basic_block_forward.1} parent=5 // pred_region
      %s2804 = ssub.s32 %s11, 2
      // Predicated region
      $region49: #{basic_block_forward.1} parent=47 // pred_check
        %p2805 = pneg %p150
      $region50: #{basic_block_forward.1} parent=47 // pred_check_branch
        %2807 = sbr.rel (%p2805) target = $region52
      $region51: #{basic_block_forward.1} parent=47 // pred_region
        %p2808 = scmp.lt.s32.totalorder %s17, 1
        %s2809 = scalar_select %p2808, %s17, 1
        %s2810 = smul.addr %s2809, 32
        %s2811 = smul.addr %s2810, 8
        %s2812 = scalar_lea.vmem %s5, %s2811
      $region52: #{basic_block_forward.1} parent=47 // pred_fallthru
        _
    $region48: #{basic_block_forward.1} parent=5 // pred_fallthru
      _
  $region6: #{basic_block_forward.1} parent=0 // loop_footer
    %s15 = sadd.s32 1, %s11
  $region7: #{basic_block_forward.1} parent=0 // loop_footer_branch
    %10 = sbr.rel target = $region3
  $region8: #{basic_block_forward.1} parent=0 // loop_exit
    _

</llo_original>
